<compile_context>
chip_gen: v6e
topology: v6e:2x2x1
jax: 0.10.0
libtpu: 0.0.40
codegen_flags: <defaults>
</compile_context>

<pallas_src>
import functools

import jax
import jax.numpy as jnp
import numpy as np
from jax import lax
from jax.experimental import pallas as pl
from jax.experimental.pallas import tpu as pltpu


# ----------------------------- kernel helpers ------------------------------ #

def _zero_halo_and_fill(xpad_ref, x_val, padding):
    """Zero only the halo ring of the padded scratch and write the interior.

    The interior is fully overwritten every grid step, so only the thin ring
    needs zeroing (done every step: with 'parallel' batch semantics different
    steps may run on different TensorCores, each with its own scratch)."""
    H, W, C = x_val.shape
    p = padding
    Wt = W + 2 * p
    dt = xpad_ref.dtype
    xpad_ref[:p, :, :] = jnp.zeros((p, Wt, C), dt)
    xpad_ref[H + p:H + 2 * p, :, :] = jnp.zeros((p, Wt, C), dt)
    xpad_ref[p:H + p, :p, :] = jnp.zeros((H, p, C), dt)
    xpad_ref[p:H + p, W + p:W + 2 * p, :] = jnp.zeros((H, p, C), dt)
    xpad_ref[p:H + p, p:W + p, :] = x_val.astype(dt)


def _conv_taps_to_acc(xpad_ref, acc_ref, w_ref, *, dilation, Hout, Wout):
    """Dilated 3x3 conv as 3 big-K MXU matmuls accumulated into an f32 scratch.

    w_ref is pre-merged to (kw, 3*Cin, Cout) so the kh taps ride the
    contraction dim (K = 3*Cin): 3 accumulation passes instead of 9, and a
    better-filled MXU on the 256-deep v6e/v7x arrays."""
    d = dilation
    K3 = w_ref.shape[1]
    for kw in range(3):
        # One sublane-window shift per kw (3 total); kh windows are major-dim slices.
        xs = xpad_ref[:, kw * d:kw * d + Wout, :]                     # (H+2p, Wout, Cin)
        slab = jnp.concatenate(
            [xs[kh * d:kh * d + Hout] for kh in range(3)], axis=-1)   # (Hout, Wout, 3*Cin)
        part = jnp.dot(slab.reshape(Hout * Wout, K3), w_ref[kw],
                       preferred_element_type=jnp.float32)
        if kw == 0:
            acc_ref[...] = part
        else:
            acc_ref[...] += part


# ------------------------------ Pallas kernels ------------------------------ #

def _conv3x3_bn_kernel(x_ref, w_ref, s_ref, b_ref, o_ref, xpad_ref, acc_ref, *,
                       dilation, padding):
    # 3x3 dilated conv (stride 1, groups 1, bias=False) + folded BatchNorm.
    _, Hout, Wout, Cout = o_ref.shape
    _zero_halo_and_fill(xpad_ref, x_ref[0], padding)
    _conv_taps_to_acc(xpad_ref, acc_ref, w_ref, dilation=dilation, Hout=Hout, Wout=Wout)
    out = acc_ref[...] * s_ref[0] + b_ref[0]
    o_ref[0] = out.reshape(Hout, Wout, Cout).astype(o_ref.dtype)


def _pool_conv3x3_bn_kernel(x_ref, w_ref, s_ref, b_ref, o_ref, xpad_ref, acc_ref, *,
                            dilation, padding, pooling_r):
    # Fused k2 branch: AvgPool(r) -> dilated 3x3 conv -> folded BN.
    # The pooled tile is written straight into the conv halo scratch (no pooled
    # tensor in HBM, no separate avgpool pallas_call).
    _, H, W, Cin = x_ref.shape
    _, Hp, Wp, Cout = o_ref.shape
    r = pooling_r
    x = x_ref[0].astype(jnp.float32)
    # Pool along H by splitting the major dim (layout no-op) and reducing.
    xh = x.reshape(Hp, r, W, Cin).sum(axis=1)                         # (Hp, W, Cin)
    # Pool along W per pooled-column group (static contiguous sublane slices),
    # assembled with one concatenate and a single dense write into the scratch.
    cols = [xh[:, wp * r:(wp + 1) * r, :].sum(axis=1, keepdims=True)
            for wp in range(Wp)]
    pooled = jnp.concatenate(cols, axis=1) * jnp.float32(1.0 / (r * r))
    _zero_halo_and_fill(xpad_ref, pooled, padding)
    _conv_taps_to_acc(xpad_ref, acc_ref, w_ref, dilation=dilation, Hout=Hp, Wout=Wp)
    out = acc_ref[...] * s_ref[0] + b_ref[0]
    o_ref[0] = out.reshape(Hp, Wp, Cout).astype(o_ref.dtype)


def _conv3x3_bn_gate_kernel(x_ref, w_ref, s_ref, b_ref, k2_ref, o_ref,
                            xpad_ref, acc_ref, *, dilation, padding, pooling_r):
    # Fused k3 branch + gate:
    #   out = conv_bn(x) * sigmoid(x + nearest_upsample(k2_pooled))
    # k2 stays at pooled resolution in HBM; the upsample happens in VMEM and the
    # result is stored per pooled-column group (no second full-size concat).
    _, Hout, Wout, Cout = o_ref.shape
    _, Hp, Wp, _ = k2_ref.shape
    r = pooling_r
    x = x_ref[0]
    _zero_halo_and_fill(xpad_ref, x, padding)
    _conv_taps_to_acc(xpad_ref, acc_ref, w_ref, dilation=dilation, Hout=Hout, Wout=Wout)
    conv_bn = (acc_ref[...] * s_ref[0] + b_ref[0]).reshape(Hout, Wout, Cout)

    k2p = k2_ref[0].astype(jnp.float32)                               # (Hp, Wp, C)
    # Upsample along H via a major-dim broadcast + reshape (layout no-op).
    k2h = jnp.broadcast_to(k2p[:, None, :, :],
                           (Hp, r, Wp, Cout)).reshape(Hp * r, Wp, Cout)
    # Upsample along W (sublane dim) fused into the gated multiply; each pooled
    # column group is stored directly into its output slice.
    for wp in range(Wp):
        xg = x[:, wp * r:(wp + 1) * r, :].astype(jnp.float32)         # (H, r, C)
        gate = jax.nn.sigmoid(xg + k2h[:, wp:wp + 1, :])              # (H,1,C) bcast
        piece = conv_bn[:, wp * r:(wp + 1) * r, :] * gate
        o_ref[0, :, wp * r:(wp + 1) * r, :] = piece.astype(o_ref.dtype)


# ----------------------------- Pallas wrappers ------------------------------ #

def _cparams():
    # Explicit scoped-VMEM budget: the default is 16 MiB on v5e / 32 MiB on v6e+,
    # well below what whole-image double-buffered blocks need at real sizes.
    return pltpu.CompilerParams(dimension_semantics=("parallel",),
                                vmem_limit_bytes=64 * 1024 * 1024)


def conv3x3_bn(x, w_merged, scale, bias, *, dilation, padding, out_dtype):
    N, H, W, Cin = x.shape
    Cout = w_merged.shape[-1]
    return pl.pallas_call(
        functools.partial(_conv3x3_bn_kernel, dilation=dilation, padding=padding),
        grid=(N,),
        in_specs=[
            pl.BlockSpec((1, H, W, Cin), lambda n: (n, 0, 0, 0)),
            pl.BlockSpec((3, 3 * Cin, Cout), lambda n: (0, 0, 0)),
            pl.BlockSpec((1, Cout), lambda n: (0, 0)),
            pl.BlockSpec((1, Cout), lambda n: (0, 0)),
        ],
        out_specs=pl.BlockSpec((1, H, W, Cout), lambda n: (n, 0, 0, 0)),
        out_shape=jax.ShapeDtypeStruct((N, H, W, Cout), out_dtype),
        scratch_shapes=[
            pltpu.VMEM((H + 2 * padding, W + 2 * padding, Cin), x.dtype),
            pltpu.VMEM((H * W, Cout), jnp.float32),
        ],
        compiler_params=_cparams(),
    )(x, w_merged, scale, bias)


def pool_conv3x3_bn(x, w_merged, scale, bias, *, dilation, padding, pooling_r, out_dtype):
    N, H, W, Cin = x.shape
    Cout = w_merged.shape[-1]
    Hp, Wp = H // pooling_r, W // pooling_r
    return pl.pallas_call(
        functools.partial(_pool_conv3x3_bn_kernel, dilation=dilation,
                          padding=padding, pooling_r=pooling_r),
        grid=(N,),
        in_specs=[
            pl.BlockSpec((1, H, W, Cin), lambda n: (n, 0, 0, 0)),
            pl.BlockSpec((3, 3 * Cin, Cout), lambda n: (0, 0, 0)),
            pl.BlockSpec((1, Cout), lambda n: (0, 0)),
            pl.BlockSpec((1, Cout), lambda n: (0, 0)),
        ],
        out_specs=pl.BlockSpec((1, Hp, Wp, Cout), lambda n: (n, 0, 0, 0)),
        out_shape=jax.ShapeDtypeStruct((N, Hp, Wp, Cout), out_dtype),
        scratch_shapes=[
            pltpu.VMEM((Hp + 2 * padding, Wp + 2 * padding, Cin), x.dtype),
            pltpu.VMEM((Hp * Wp, Cout), jnp.float32),
        ],
        compiler_params=_cparams(),
    )(x, w_merged, scale, bias)


def conv3x3_bn_gate(x, w_merged, scale, bias, k2_pooled, *, dilation, padding,
                    pooling_r, out_dtype):
    N, H, W, Cin = x.shape
    Cout = w_merged.shape[-1]
    _, Hp, Wp, _ = k2_pooled.shape
    return pl.pallas_call(
        functools.partial(_conv3x3_bn_gate_kernel, dilation=dilation,
                          padding=padding, pooling_r=pooling_r),
        grid=(N,),
        in_specs=[
            pl.BlockSpec((1, H, W, Cin), lambda n: (n, 0, 0, 0)),
            pl.BlockSpec((3, 3 * Cin, Cout), lambda n: (0, 0, 0)),
            pl.BlockSpec((1, Cout), lambda n: (0, 0)),
            pl.BlockSpec((1, Cout), lambda n: (0, 0)),
            pl.BlockSpec((1, Hp, Wp, Cout), lambda n: (n, 0, 0, 0)),
        ],
        out_specs=pl.BlockSpec((1, H, W, Cout), lambda n: (n, 0, 0, 0)),
        out_shape=jax.ShapeDtypeStruct((N, H, W, Cout), out_dtype),
        scratch_shapes=[
            pltpu.VMEM((H + 2 * padding, W + 2 * padding, Cin), x.dtype),
            pltpu.VMEM((H * W, Cout), jnp.float32),
        ],
        compiler_params=_cparams(),
    )(x, w_merged, scale, bias, k2_pooled)


# ------------------------------ SCConv forward ------------------------------ #

def fold_bn(gamma, beta, mean, var, eps=1e-5):
    scale = gamma / jnp.sqrt(var + eps)
    return scale, beta - mean * scale


def _round_up(v, m):
    return -(-v // m) * m


def _pad_last(a, target):
    pad = target - a.shape[-1]
    if pad == 0:
        return a
    return jnp.pad(a, [(0, 0)] * (a.ndim - 1) + [(0, pad)])


def _prep_conv_bn(w_oihw, bn, cinp, coutp, compute_dtype):
    # OIHW -> HWIO, zero-pad channels to the 128-lane width, merge the kh taps
    # into the contraction dim (kw, 3*Cin, Cout), fold BN, cast weights for the MXU.
    cout, cin = w_oihw.shape[0], w_oihw.shape[1]
    w = jnp.transpose(w_oihw, (2, 3, 1, 0))                             # (kh, kw, Cin, Cout)
    w = jnp.pad(w, ((0, 0), (0, 0), (0, cinp - cin), (0, coutp - cout)))
    w = jnp.transpose(w, (1, 0, 2, 3)).reshape(3, 3 * cinp, coutp)      # (kw, kh*Cin, Cout)
    scale, bias = fold_bn(*bn)
    s = _pad_last(scale.reshape(1, cout).astype(jnp.float32), coutp)
    b = _pad_last(bias.reshape(1, cout).astype(jnp.float32), coutp)
    return w.astype(compute_dtype), s, b


def scconv_pallas(x_nchw, p, *, pooling_r=4, dilation=2, padding=2,
                  compute_dtype=jnp.bfloat16):
    N, C, H, W = x_nchw.shape
    assert padding == dilation, "only the 'same'-output configuration is supported"
    assert H % pooling_r == 0 and W % pooling_r == 0
    out_dtype = x_nchw.dtype
    Cp = _round_up(C, 128)   # lane-dense channels (no-op when C is already a multiple)

    # NCHW -> NHWC; channel pad + cast to the MXU/HBM operand dtype once.
    # TODO(synk): in an NHWC end-to-end model, call the kernels directly without this
    #             boundary transpose (one extra HBM pass each way for NCHW parity).
    x = _pad_last(jnp.transpose(x_nchw, (0, 2, 3, 1)), Cp).astype(compute_dtype)

    w2, s2, b2 = _prep_conv_bn(p["w2"], p["bn2"], Cp, Cp, compute_dtype)
    w3, s3, b3 = _prep_conv_bn(p["w3"], p["bn3"], Cp, Cp, compute_dtype)
    w4, s4, b4 = _prep_conv_bn(p["w4"], p["bn4"], Cp, Cp, compute_dtype)

    # k2 branch: fused avgpool + dilated conv + BN (kept at pooled resolution).
    k2 = pool_conv3x3_bn(x, w2, s2, b2, dilation=dilation, padding=padding,
                         pooling_r=pooling_r, out_dtype=compute_dtype)
    # k3 branch + nearest upsample + sigmoid gate + multiply, all in one kernel.
    mid = conv3x3_bn_gate(x, w3, s3, b3, k2, dilation=dilation, padding=padding,
                          pooling_r=pooling_r, out_dtype=compute_dtype)
    # k4
    out = conv3x3_bn(mid, w4, s4, b4, dilation=dilation, padding=padding,
                     out_dtype=out_dtype)
    return jnp.transpose(out[..., :C], (0, 3, 1, 2))                    # NHWC -> NCHW


# ------------------------------ pure-JAX reference --------------------------- #

def scconv_ref(x, p, *, pooling_r=4):
    def conv(a, w):
        return lax.conv_general_dilated(
            a, w, window_strides=(1, 1), padding=((2, 2), (2, 2)),
            rhs_dilation=(2, 2), dimension_numbers=("NCHW", "OIHW", "NCHW"))

    def bn(a, gamma, beta, mean, var, eps=1e-5):
        rs = lambda v: v.reshape(1, -1, 1, 1)
        return (a - rs(mean)) / jnp.sqrt(rs(var) + eps) * rs(gamma) + rs(beta)

    pooled = lax.reduce_window(x, 0.0, lax.add, (1, 1, pooling_r, pooling_r),
                               (1, 1, pooling_r, pooling_r), "VALID") / (pooling_r ** 2)
    k2 = bn(conv(pooled, p["w2"]), *p["bn2"])
    up = jnp.repeat(jnp.repeat(k2, pooling_r, axis=2), pooling_r, axis=3)
    gate = jax.nn.sigmoid(x + up)
    k3 = bn(conv(x, p["w3"]), *p["bn3"])
    return bn(conv(k3 * gate, p["w4"]), *p["bn4"])


# ----------------------------------- main ------------------------------------ #

def init_params(key, inplanes, planes):
    ks = jax.random.split(key, 15)

    def conv_w(k):
        return 0.1 * jax.random.normal(k, (planes, inplanes, 3, 3), jnp.float32)

    def bn_params(k0, k1, k2, k3):
        gamma = 1.0 + 0.1 * jax.random.normal(k0, (planes,), jnp.float32)
        beta = 0.1 * jax.random.normal(k1, (planes,), jnp.float32)
        mean = 0.1 * jax.random.normal(k2, (planes,), jnp.float32)
        var = 0.5 + jax.random.uniform(k3, (planes,), jnp.float32)
        return (gamma, beta, mean, var)

    return {
        "w2": conv_w(ks[0]), "bn2": bn_params(*ks[1:5]),
        "w3": conv_w(ks[5]), "bn3": bn_params(*ks[6:10]),
        "w4": conv_w(ks[10]), "bn4": bn_params(*ks[11:15]),
    }


if __name__ == "__main__":
    key = jax.random.PRNGKey(0)
    kx, kp = jax.random.split(key)

    N, C, H, W = 2, 4, 16, 16          # inplanes = planes = 4 (gating add requires it)
    x = jax.random.normal(kx, (N, C, H, W), jnp.float32)
    params = init_params(kp, C, C)

    ref = jax.block_until_ready(scconv_ref(x, params))

    # Exact structural check with f32 MXU operands.
    out_f32 = jax.block_until_ready(scconv_pallas(x, params, compute_dtype=jnp.float32))
    np.testing.assert_allclose(np.asarray(out_f32), np.asarray(ref), rtol=1e-4, atol=1e-4)

    # Default performance path: bf16 MXU operands, f32 accumulation (looser tolerance).
    out = jax.block_until_ready(scconv_pallas(x, params))
    np.testing.assert_allclose(np.asarray(out), np.asarray(ref), rtol=5e-2, atol=5e-2)

    assert out.shape == (N, C, H, W) and out.dtype == jnp.float32
    print("KERNEL_OK")
</pallas_src>

<mosaic_0001>
module attributes {stable_mosaic.version = 11 : i64} {
  func.func @_pool_conv3x3_bn_kernel(%arg0: i32, %arg1: memref<1x16x16x128xf32, #tpu.memory_space<vmem>>, %arg2: memref<3x384x128xf32, #tpu.memory_space<vmem>>, %arg3: memref<1x128xf32, #tpu.memory_space<vmem>>, %arg4: memref<1x128xf32, #tpu.memory_space<vmem>>, %arg5: memref<1x4x4x128xf32, #tpu.memory_space<vmem>>, %arg6: memref<8x8x128xf32, #tpu.memory_space<vmem>>, %arg7: memref<16x128xf32, #tpu.memory_space<vmem>>) attributes {dimension_semantics = [#tpu.dimension_semantics<parallel>], iteration_bounds = array<i64: 2>, scalar_prefetch = 0 : i64, scratch_operands = 2 : i64, tpu.core_type = #tpu.core_type<tc>, window_params = [{transform_indices = @transform_0, window_bounds = array<i64: 1, 16, 16, 128>}, {pipeline_mode = #tpu.pipeline_mode<synchronous>, transform_indices = @transform_1, window_bounds = array<i64: 3, 384, 128>}, {pipeline_mode = #tpu.pipeline_mode<synchronous>, transform_indices = @transform_2, window_bounds = array<i64: 1, 128>}, {pipeline_mode = #tpu.pipeline_mode<synchronous>, transform_indices = @transform_3, window_bounds = array<i64: 1, 128>}, {transform_indices = @transform_4, window_bounds = array<i64: 1, 4, 4, 128>}]} {
    %c0 = arith.constant 0 : index
    %c0_0 = arith.constant 0 : index
    %c0_1 = arith.constant 0 : index
    %c0_2 = arith.constant 0 : index
    %0 = vector.load %arg1[%c0, %c0_0, %c0_1, %c0_2] : memref<1x16x16x128xf32, #tpu.memory_space<vmem>>, vector<1x16x16x128xf32>
    %1 = vector.shape_cast %0 : vector<1x16x16x128xf32> to vector<16x16x128xf32>
    %2 = vector.shape_cast %1 : vector<16x16x128xf32> to vector<4x4x16x128xf32>
    %cst = arith.constant dense<0.000000e+00> : vector<4x16x128xf32>
    %3 = vector.multi_reduction <add>, %2, %cst [1] : vector<4x4x16x128xf32> to vector<4x16x128xf32>
    %4 = vector.extract_strided_slice %3 {offsets = [0, 0, 0], sizes = [4, 4, 128], strides = [1, 1, 1]} : vector<4x16x128xf32> to vector<4x4x128xf32>
    %cst_3 = arith.constant dense<0.000000e+00> : vector<4x128xf32>
    %5 = vector.multi_reduction <add>, %4, %cst_3 [1] : vector<4x4x128xf32> to vector<4x128xf32>
    %6 = vector.shape_cast %5 : vector<4x128xf32> to vector<4x1x128xf32>
    %7 = vector.extract_strided_slice %3 {offsets = [0, 4, 0], sizes = [4, 4, 128], strides = [1, 1, 1]} : vector<4x16x128xf32> to vector<4x4x128xf32>
    %cst_4 = arith.constant dense<0.000000e+00> : vector<4x128xf32>
    %8 = vector.multi_reduction <add>, %7, %cst_4 [1] : vector<4x4x128xf32> to vector<4x128xf32>
    %9 = vector.shape_cast %8 : vector<4x128xf32> to vector<4x1x128xf32>
    %10 = vector.extract_strided_slice %3 {offsets = [0, 8, 0], sizes = [4, 4, 128], strides = [1, 1, 1]} : vector<4x16x128xf32> to vector<4x4x128xf32>
    %cst_5 = arith.constant dense<0.000000e+00> : vector<4x128xf32>
    %11 = vector.multi_reduction <add>, %10, %cst_5 [1] : vector<4x4x128xf32> to vector<4x128xf32>
    %12 = vector.shape_cast %11 : vector<4x128xf32> to vector<4x1x128xf32>
    %13 = vector.extract_strided_slice %3 {offsets = [0, 12, 0], sizes = [4, 4, 128], strides = [1, 1, 1]} : vector<4x16x128xf32> to vector<4x4x128xf32>
    %cst_6 = arith.constant dense<0.000000e+00> : vector<4x128xf32>
    %14 = vector.multi_reduction <add>, %13, %cst_6 [1] : vector<4x4x128xf32> to vector<4x128xf32>
    %15 = vector.shape_cast %14 : vector<4x128xf32> to vector<4x1x128xf32>
    %16 = tpu.concatenate %6, %9, %12, %15 in 1 : vector<4x1x128xf32>, vector<4x1x128xf32>, vector<4x1x128xf32>, vector<4x1x128xf32> -> vector<4x4x128xf32>
    %cst_7 = arith.constant 6.250000e-02 : f32
    %17 = vector.broadcast %cst_7 : f32 to vector<4x4x128xf32>
    %18 = arith.mulf %16, %17 : vector<4x4x128xf32>
    %cst_8 = arith.constant 0.000000e+00 : f32
    %19 = vector.broadcast %cst_8 : f32 to vector<2x8x128xf32>
    %c0_9 = arith.constant 0 : index
    %c0_10 = arith.constant 0 : index
    %c0_11 = arith.constant 0 : index
    %20 = vector.load %arg6[%c0_9, %c0_10, %c0_11] : memref<8x8x128xf32, #tpu.memory_space<vmem>>, vector<2x8x128xf32>
    tpu.vector_store %arg6[%c0_9, %c0_10, %c0_11], %19 {strides = array<i32>} : memref<8x8x128xf32, #tpu.memory_space<vmem>>, vector<2x8x128xf32>,
    %cst_12 = arith.constant 0.000000e+00 : f32
    %21 = vector.broadcast %cst_12 : f32 to vector<2x8x128xf32>
    %c6 = arith.constant 6 : index
    %c0_13 = arith.constant 0 : index
    %c0_14 = arith.constant 0 : index
    %22 = vector.load %arg6[%c6, %c0_13, %c0_14] : memref<8x8x128xf32, #tpu.memory_space<vmem>>, vector<2x8x128xf32>
    tpu.vector_store %arg6[%c6, %c0_13, %c0_14], %21 {strides = array<i32>} : memref<8x8x128xf32, #tpu.memory_space<vmem>>, vector<2x8x128xf32>,
    %cst_15 = arith.constant 0.000000e+00 : f32
    %23 = vector.broadcast %cst_15 : f32 to vector<4x2x128xf32>
    %c2 = arith.constant 2 : index
    %c0_16 = arith.constant 0 : index
    %c0_17 = arith.constant 0 : index
    %24 = vector.load %arg6[%c2, %c0_16, %c0_17] : memref<8x8x128xf32, #tpu.memory_space<vmem>>, vector<4x2x128xf32>
    tpu.vector_store %arg6[%c2, %c0_16, %c0_17], %23 {strides = array<i32>} : memref<8x8x128xf32, #tpu.memory_space<vmem>>, vector<4x2x128xf32>,
    %cst_18 = arith.constant 0.000000e+00 : f32
    %25 = vector.broadcast %cst_18 : f32 to vector<4x2x128xf32>
    %c2_19 = arith.constant 2 : index
    %c6_20 = arith.constant 6 : index
    %c0_21 = arith.constant 0 : index
    %26 = vector.load %arg6[%c2_19, %c6_20, %c0_21] : memref<8x8x128xf32, #tpu.memory_space<vmem>>, vector<4x2x128xf32>
    tpu.vector_store %arg6[%c2_19, %c6_20, %c0_21], %25 {strides = array<i32>} : memref<8x8x128xf32, #tpu.memory_space<vmem>>, vector<4x2x128xf32>,
    %c2_22 = arith.constant 2 : index
    %c2_23 = arith.constant 2 : index
    %c0_24 = arith.constant 0 : index
    %27 = vector.load %arg6[%c2_22, %c2_23, %c0_24] : memref<8x8x128xf32, #tpu.memory_space<vmem>>, vector<4x4x128xf32>
    tpu.vector_store %arg6[%c2_22, %c2_23, %c0_24], %18 {strides = array<i32>} : memref<8x8x128xf32, #tpu.memory_space<vmem>>, vector<4x4x128xf32>,
    %c0_25 = arith.constant 0 : index
    %c0_26 = arith.constant 0 : index
    %c0_27 = arith.constant 0 : index
    %28 = vector.load %arg6[%c0_25, %c0_26, %c0_27] : memref<8x8x128xf32, #tpu.memory_space<vmem>>, vector<8x4x128xf32>
    %29 = vector.extract_strided_slice %28 {offsets = [0, 0, 0], sizes = [4, 4, 128], strides = [1, 1, 1]} : vector<8x4x128xf32> to vector<4x4x128xf32>
    %30 = vector.extract_strided_slice %28 {offsets = [2, 0, 0], sizes = [4, 4, 128], strides = [1, 1, 1]} : vector<8x4x128xf32> to vector<4x4x128xf32>
    %31 = vector.extract_strided_slice %28 {offsets = [4, 0, 0], sizes = [4, 4, 128], strides = [1, 1, 1]} : vector<8x4x128xf32> to vector<4x4x128xf32>
    %32 = tpu.concatenate %29, %30, %31 in 2 : vector<4x4x128xf32>, vector<4x4x128xf32>, vector<4x4x128xf32> -> vector<4x4x384xf32>
    %33 = vector.shape_cast %32 : vector<4x4x384xf32> to vector<16x384xf32>
    %c0_28 = arith.constant 0 : index
    %c0_29 = arith.constant 0 : index
    %c0_30 = arith.constant 0 : index
    %34 = vector.load %arg2[%c0_28, %c0_29, %c0_30] : memref<3x384x128xf32, #tpu.memory_space<vmem>>, vector<1x384x128xf32>
    %35 = vector.shape_cast %34 : vector<1x384x128xf32> to vector<384x128xf32>
    %cst_31 = arith.constant dense<0.000000e+00> : vector<16x128xf32>
    %36 = tpu.matmul %33, %35, %cst_31 {dimension_numbers = #tpu.dot_dimension_numbers<[1], [0], [0], [1], [0, 0, 1, 1], [], []>} : vector<16x384xf32>, vector<384x128xf32>, vector<16x128xf32> -> vector<16x128xf32>
    %c0_32 = arith.constant 0 : index
    %c0_33 = arith.constant 0 : index
    %37 = vector.load %arg7[%c0_32, %c0_33] : memref<16x128xf32, #tpu.memory_space<vmem>>, vector<16x128xf32>
    tpu.vector_store %arg7[%c0_32, %c0_33], %36 {strides = array<i32>} : memref<16x128xf32, #tpu.memory_space<vmem>>, vector<16x128xf32>,
    %c0_34 = arith.constant 0 : index
    %c2_35 = arith.constant 2 : index
    %c0_36 = arith.constant 0 : index
    %38 = vector.load %arg6[%c0_34, %c2_35, %c0_36] : memref<8x8x128xf32, #tpu.memory_space<vmem>>, vector<8x4x128xf32>
    %39 = vector.extract_strided_slice %38 {offsets = [0, 0, 0], sizes = [4, 4, 128], strides = [1, 1, 1]} : vector<8x4x128xf32> to vector<4x4x128xf32>
    %40 = vector.extract_strided_slice %38 {offsets = [2, 0, 0], sizes = [4, 4, 128], strides = [1, 1, 1]} : vector<8x4x128xf32> to vector<4x4x128xf32>
    %41 = vector.extract_strided_slice %38 {offsets = [4, 0, 0], sizes = [4, 4, 128], strides = [1, 1, 1]} : vector<8x4x128xf32> to vector<4x4x128xf32>
    %42 = tpu.concatenate %39, %40, %41 in 2 : vector<4x4x128xf32>, vector<4x4x128xf32>, vector<4x4x128xf32> -> vector<4x4x384xf32>
    %43 = vector.shape_cast %42 : vector<4x4x384xf32> to vector<16x384xf32>
    %c1 = arith.constant 1 : index
    %c0_37 = arith.constant 0 : index
    %c0_38 = arith.constant 0 : index
    %44 = vector.load %arg2[%c1, %c0_37, %c0_38] : memref<3x384x128xf32, #tpu.memory_space<vmem>>, vector<1x384x128xf32>
    %45 = vector.shape_cast %44 : vector<1x384x128xf32> to vector<384x128xf32>
    %cst_39 = arith.constant dense<0.000000e+00> : vector<16x128xf32>
    %46 = tpu.matmul %43, %45, %cst_39 {dimension_numbers = #tpu.dot_dimension_numbers<[1], [0], [0], [1], [0, 0, 1, 1], [], []>} : vector<16x384xf32>, vector<384x128xf32>, vector<16x128xf32> -> vector<16x128xf32>
    %c0_40 = arith.constant 0 : index
    %c0_41 = arith.constant 0 : index
    %47 = vector.load %arg7[%c0_40, %c0_41] : memref<16x128xf32, #tpu.memory_space<vmem>>, vector<16x128xf32>
    %48 = arith.addf %47, %46 : vector<16x128xf32>
    %c0_42 = arith.constant 0 : index
    %c0_43 = arith.constant 0 : index
    %49 = vector.load %arg7[%c0_42, %c0_43] : memref<16x128xf32, #tpu.memory_space<vmem>>, vector<16x128xf32>
    tpu.vector_store %arg7[%c0_42, %c0_43], %48 {strides = array<i32>} : memref<16x128xf32, #tpu.memory_space<vmem>>, vector<16x128xf32>,
    %c0_44 = arith.constant 0 : index
    %c4 = arith.constant 4 : index
    %c0_45 = arith.constant 0 : index
    %50 = vector.load %arg6[%c0_44, %c4, %c0_45] : memref<8x8x128xf32, #tpu.memory_space<vmem>>, vector<8x4x128xf32>
    %51 = vector.extract_strided_slice %50 {offsets = [0, 0, 0], sizes = [4, 4, 128], strides = [1, 1, 1]} : vector<8x4x128xf32> to vector<4x4x128xf32>
    %52 = vector.extract_strided_slice %50 {offsets = [2, 0, 0], sizes = [4, 4, 128], strides = [1, 1, 1]} : vector<8x4x128xf32> to vector<4x4x128xf32>
    %53 = vector.extract_strided_slice %50 {offsets = [4, 0, 0], sizes = [4, 4, 128], strides = [1, 1, 1]} : vector<8x4x128xf32> to vector<4x4x128xf32>
    %54 = tpu.concatenate %51, %52, %53 in 2 : vector<4x4x128xf32>, vector<4x4x128xf32>, vector<4x4x128xf32> -> vector<4x4x384xf32>
    %55 = vector.shape_cast %54 : vector<4x4x384xf32> to vector<16x384xf32>
    %c2_46 = arith.constant 2 : index
    %c0_47 = arith.constant 0 : index
    %c0_48 = arith.constant 0 : index
    %56 = vector.load %arg2[%c2_46, %c0_47, %c0_48] : memref<3x384x128xf32, #tpu.memory_space<vmem>>, vector<1x384x128xf32>
    %57 = vector.shape_cast %56 : vector<1x384x128xf32> to vector<384x128xf32>
    %cst_49 = arith.constant dense<0.000000e+00> : vector<16x128xf32>
    %58 = tpu.matmul %55, %57, %cst_49 {dimension_numbers = #tpu.dot_dimension_numbers<[1], [0], [0], [1], [0, 0, 1, 1], [], []>} : vector<16x384xf32>, vector<384x128xf32>, vector<16x128xf32> -> vector<16x128xf32>
    %c0_50 = arith.constant 0 : index
    %c0_51 = arith.constant 0 : index
    %59 = vector.load %arg7[%c0_50, %c0_51] : memref<16x128xf32, #tpu.memory_space<vmem>>, vector<16x128xf32>
    %60 = arith.addf %59, %58 : vector<16x128xf32>
    %c0_52 = arith.constant 0 : index
    %c0_53 = arith.constant 0 : index
    %61 = vector.load %arg7[%c0_52, %c0_53] : memref<16x128xf32, #tpu.memory_space<vmem>>, vector<16x128xf32>
    tpu.vector_store %arg7[%c0_52, %c0_53], %60 {strides = array<i32>} : memref<16x128xf32, #tpu.memory_space<vmem>>, vector<16x128xf32>,
    %c0_54 = arith.constant 0 : index
    %c0_55 = arith.constant 0 : index
    %62 = vector.load %arg7[%c0_54, %c0_55] : memref<16x128xf32, #tpu.memory_space<vmem>>, vector<16x128xf32>
    %c0_56 = arith.constant 0 : index
    %c0_57 = arith.constant 0 : index
    %63 = vector.load %arg3[%c0_56, %c0_57] : memref<1x128xf32, #tpu.memory_space<vmem>>, vector<1x128xf32>
    %64 = vector.shape_cast %63 : vector<1x128xf32> to vector<128xf32>
    %65 = vector.shape_cast %64 : vector<128xf32> to vector<1x128xf32>
    %66 = vector.broadcast %65 : vector<1x128xf32> to vector<16x128xf32>
    %67 = arith.mulf %62, %66 : vector<16x128xf32>
    %c0_58 = arith.constant 0 : index
    %c0_59 = arith.constant 0 : index
    %68 = vector.load %arg4[%c0_58, %c0_59] : memref<1x128xf32, #tpu.memory_space<vmem>>, vector<1x128xf32>
    %69 = vector.shape_cast %68 : vector<1x128xf32> to vector<128xf32>
    %70 = vector.shape_cast %69 : vector<128xf32> to vector<1x128xf32>
    %71 = vector.broadcast %70 : vector<1x128xf32> to vector<16x128xf32>
    %72 = arith.addf %67, %71 : vector<16x128xf32>
    %73 = vector.shape_cast %72 : vector<16x128xf32> to vector<4x4x128xf32>
    %c0_60 = arith.constant 0 : index
    %c0_61 = arith.constant 0 : index
    %c0_62 = arith.constant 0 : index
    %c0_63 = arith.constant 0 : index
    %74 = vector.load %arg5[%c0_60, %c0_61, %c0_62, %c0_63] : memref<1x4x4x128xf32, #tpu.memory_space<vmem>>, vector<1x4x4x128xf32>
    %75 = vector.shape_cast %74 : vector<1x4x4x128xf32> to vector<4x4x128xf32>
    %76 = vector.shape_cast %73 : vector<4x4x128xf32> to vector<1x4x4x128xf32>
    tpu.vector_store %arg5[%c0_60, %c0_61, %c0_62, %c0_63], %76 {strides = array<i32>} : memref<1x4x4x128xf32, #tpu.memory_space<vmem>>, vector<1x4x4x128xf32>,
    return
  }
  func.func @transform_0(%arg0: i32) -> (i32, i32, i32, i32) {
    %c0_i32 = arith.constant 0 : i32
    %c0_i32_0 = arith.constant 0 : i32
    %c0_i32_1 = arith.constant 0 : i32
    %c0_i32_2 = arith.constant 0 : i32
    return %arg0, %c0_i32, %c0_i32_0, %c0_i32_1 : i32, i32, i32, i32
  }
  func.func @transform_1(%arg0: i32) -> (i32, i32, i32) {
    %c0_i32 = arith.constant 0 : i32
    %c0_i32_0 = arith.constant 0 : i32
    %c0_i32_1 = arith.constant 0 : i32
    %c0_i32_2 = arith.constant 0 : i32
    return %c0_i32, %c0_i32_0, %c0_i32_1 : i32, i32, i32
  }
  func.func @transform_2(%arg0: i32) -> (i32, i32) {
    %c0_i32 = arith.constant 0 : i32
    %c0_i32_0 = arith.constant 0 : i32
    %c0_i32_1 = arith.constant 0 : i32
    return %c0_i32, %c0_i32_0 : i32, i32
  }
  func.func @transform_3(%arg0: i32) -> (i32, i32) {
    %c0_i32 = arith.constant 0 : i32
    %c0_i32_0 = arith.constant 0 : i32
    %c0_i32_1 = arith.constant 0 : i32
    return %c0_i32, %c0_i32_0 : i32, i32
  }
  func.func @transform_4(%arg0: i32) -> (i32, i32, i32, i32) {
    %c0_i32 = arith.constant 0 : i32
    %c0_i32_0 = arith.constant 0 : i32
    %c0_i32_1 = arith.constant 0 : i32
    %c0_i32_2 = arith.constant 0 : i32
    return %arg0, %c0_i32, %c0_i32_0, %c0_i32_1 : i32, i32, i32, i32
  }
}

</mosaic_0001>

<llo_original>
// kernel: tpu_custom_call.1
$region0: #{tpu_custom_call.1}
  #allocation0 [shape = 'u32[]', space=smem, size = 0x4, offset = 0x4, fixed_abs, tag = 'smem constant byte address 0x4 - core index']
  #allocation1 [shape = 'u32[144,128]{1,0:T(1,128)}', space=vmem, size = 0x12000, scoped, tag = 'internal scratch']
  #allocation2 [shape = 'f32[8,8,128]{2,1,0:T(8,128)}', space=vmem, size = 0x8000, scoped, tag = 'scratch operand']
  #allocation3 [shape = 'f32[16,128]{1,0:T(8,128)}', space=vmem, size = 0x2000, scoped, tag = 'scratch operand']
  %s0 = inlined_call_operand.hbm [shape: f32[2,16,16,128], index: 0, kind: input, shape index: {}]
  %s1 = inlined_call_operand.hbm [shape: f32[3,384,128], index: 1, kind: input, shape index: {}]
  %s2 = inlined_call_operand.vmem [shape: f32[1,128], index: 2, kind: input, shape index: {}]
  %s3 = inlined_call_operand.vmem [shape: f32[1,128], index: 3, kind: input, shape index: {}]
  %s4 = inlined_call_operand.hbm [shape: f32[2,4,4,128], index: 4, kind: output, shape index: {}]
  %s5 = sld [smem:[#allocation0]]
  $region57: #{tpu_custom_call.1} parent=0
    _
  %s7 = ssub.s32 1, %s5
  %s8 = scalar_select 0, %s7, %s5
  $region1: #{tpu_custom_call.1} parent=0
    #allocation4 [shape = 'u8[262144]{0}', space=vmem, size = 0x40000, scoped, tag = 'input window, operand 0']
    #allocation5 [shape = 's32[2]{0}', space=sflag, size = 0x8, scoped, tag = 'scoped memory for tpu_custom_call.1']
    #allocation6 [shape = 's32[2]{0}', space=sflag, size = 0x8, scoped, tag = 'scoped memory for tpu_custom_call.1']
    #allocation7 [shape = 'u8[589824]{0}', space=vmem, size = 0x90000, scoped, tag = 'input window, operand 1, single buffered']
    #allocation8 [shape = 's32[1]{0}', space=sflag, size = 0x4, scoped, tag = 'scoped memory for tpu_custom_call.1']
    #allocation9 [shape = 'u8[16384]{0}', space=vmem, size = 0x4000, scoped, tag = 'output window, operand 0']
    %9 = vsyncpa [#allocation5], 0
    %s10 = scalar_lea.sflag [#allocation5], 1
    %11 = vsyncpa %s10, 0
    %12 = vsyncpa [#allocation8], 0
    %13 = vsyncpa [#allocation6], 0
    %s14 = scalar_lea.sflag [#allocation6], 1
    %15 = vsyncpa %s14, 0
    loop: start=0, step=1, limit=4
    $region2: #{tpu_custom_call.1} parent=1 // loop_pre_header
      _
    $region3: #{tpu_custom_call.1} parent=1 // loop_header
      %s17 = sphi 0, %s21
      %p18 = scmp.ge.s32.totalorder %s17, 4
      %s27 = sphi 0, %s29
      %s30 = sphi 0, %s27
      %s31 = sphi 0, %s30
      %s47 = sphi 0, %s31
      %s51 = sphi 0, %s51
      %s53 = sphi 0, %s51
      %s54 = sphi 0, %s53
      %s68 = sphi 0, %s54
      %s72 = sphi 0, %s72
      %s74 = sphi 0, %s72
      %s75 = sphi 0, %s74
      %s89 = sphi 0, %s75
      %s93 = sphi 0, %s93
      %s95 = sphi 0, %s93
      %s96 = sphi 0, %s95
      %s110 = sphi 0, %s96
      %s116 = sphi 0, %s118
      %s119 = sphi 0, %s116
      %s120 = sphi 0, %s119
      %s136 = sphi 0, %s120
    $region4: #{tpu_custom_call.1} parent=1 // loop_header_branch
      %20 = sbr.rel (%p18) target = $region8
    $region5: #{tpu_custom_call.1} parent=1 // loop_body
      %s22 = ssub.s32 %s17, 1
      %s23 = ssub.s32 %s17, 2
      %s24 = sadd.s32 %s17, 1
      %s25 = ssub.s32 %s17, %s24
      %p26 = scmp.eq.s32.totalorder %s25, 0
      %s28 = sadd.s32 %s27, 1
      %s29 = scalar_select %p26, %s27, %s28
      %p32 = pneg %p26
      %p33 = scmp.eq.s32.totalorder %s17, 1
      %p34 = por %p32, %p33
      %p35 = scmp.ne.s32.totalorder %s27, %s30
      %p36 = scmp.eq.s32.totalorder %s17, 0
      %p37 = por %p35, %p36
      %p38 = scmp.ne.s32.totalorder %s27, %s30
      %p39 = scmp.eq.s32.totalorder %s22, 1
      %p40 = por %p38, %p39
      %p41 = scmp.ne.s32.totalorder %s30, %s31
      %p42 = scmp.eq.s32.totalorder %s22, 0
      %p43 = por %p41, %p42
      %p44 = scmp.ne.s32.totalorder %s30, %s31
      %p45 = scmp.eq.s32.totalorder %s23, 1
      %p46 = por %p44, %p45
      %p48 = scmp.ne.s32.totalorder %s31, %s47
      %p49 = scmp.eq.s32.totalorder %s23, 0
      %p50 = por %p48, %p49
      %s52 = sadd.s32 %s51, 1
      %p55 = scmp.eq.s32.totalorder %s17, 1
      %p56 = scmp.ne.s32.totalorder %s51, %s53
      %p57 = scmp.eq.s32.totalorder %s17, 0
      %p58 = por %p56, %p57
      %p59 = scmp.ne.s32.totalorder %s51, %s53
      %p60 = scmp.eq.s32.totalorder %s22, 1
      %p61 = por %p59, %p60
      %p62 = scmp.ne.s32.totalorder %s53, %s54
      %p63 = scmp.eq.s32.totalorder %s22, 0
      %p64 = por %p62, %p63
      %p65 = scmp.ne.s32.totalorder %s53, %s54
      %p66 = scmp.eq.s32.totalorder %s23, 1
      %p67 = por %p65, %p66
      %p69 = scmp.ne.s32.totalorder %s54, %s68
      %p70 = scmp.eq.s32.totalorder %s23, 0
      %p71 = por %p69, %p70
      %s73 = sadd.s32 %s72, 1
      %p76 = scmp.eq.s32.totalorder %s17, 1
      %p77 = scmp.ne.s32.totalorder %s72, %s74
      %p78 = scmp.eq.s32.totalorder %s17, 0
      %p79 = por %p77, %p78
      %p80 = scmp.ne.s32.totalorder %s72, %s74
      %p81 = scmp.eq.s32.totalorder %s22, 1
      %p82 = por %p80, %p81
      %p83 = scmp.ne.s32.totalorder %s74, %s75
      %p84 = scmp.eq.s32.totalorder %s22, 0
      %p85 = por %p83, %p84
      %p86 = scmp.ne.s32.totalorder %s74, %s75
      %p87 = scmp.eq.s32.totalorder %s23, 1
      %p88 = por %p86, %p87
      %p90 = scmp.ne.s32.totalorder %s75, %s89
      %p91 = scmp.eq.s32.totalorder %s23, 0
      %p92 = por %p90, %p91
      %s94 = sadd.s32 %s93, 1
      %p97 = scmp.eq.s32.totalorder %s17, 1
      %p98 = scmp.ne.s32.totalorder %s93, %s95
      %p99 = scmp.eq.s32.totalorder %s17, 0
      %p100 = por %p98, %p99
      %p101 = scmp.ne.s32.totalorder %s93, %s95
      %p102 = scmp.eq.s32.totalorder %s22, 1
      %p103 = por %p101, %p102
      %p104 = scmp.ne.s32.totalorder %s95, %s96
      %p105 = scmp.eq.s32.totalorder %s22, 0
      %p106 = por %p104, %p105
      %p107 = scmp.ne.s32.totalorder %s95, %s96
      %p108 = scmp.eq.s32.totalorder %s23, 1
      %p109 = por %p107, %p108
      %p111 = scmp.ne.s32.totalorder %s96, %s110
      %p112 = scmp.eq.s32.totalorder %s23, 0
      %p113 = por %p111, %p112
      %s114 = ssub.s32 %s17, %s24
      %p115 = scmp.eq.s32.totalorder %s114, 0
      %s117 = sadd.s32 %s116, 1
      %s118 = scalar_select %p115, %s116, %s117
      %p121 = pneg %p115
      %p122 = scmp.eq.s32.totalorder %s17, 1
      %p123 = por %p121, %p122
      %p124 = scmp.ne.s32.totalorder %s116, %s119
      %p125 = scmp.eq.s32.totalorder %s17, 0
      %p126 = por %p124, %p125
      %p127 = scmp.ne.s32.totalorder %s116, %s119
      %p128 = scmp.eq.s32.totalorder %s22, 1
      %p129 = por %p127, %p128
      %p130 = scmp.ne.s32.totalorder %s119, %s120
      %p131 = scmp.eq.s32.totalorder %s22, 0
      %p132 = por %p130, %p131
      %p133 = scmp.ne.s32.totalorder %s119, %s120
      %p134 = scmp.eq.s32.totalorder %s23, 1
      %p135 = por %p133, %p134
      %p137 = scmp.ne.s32.totalorder %s120, %s136
      %p138 = scmp.eq.s32.totalorder %s23, 0
      %p139 = por %p137, %p138
      %p140 = scmp.le.s32.totalorder 1, %s17
      %p141 = scmp.lt.s32.totalorder %s17, 3
      %p142 = pnand %p140, %p141
      %p143 = pneg %p142
      // Predicated region
      $region9: #{tpu_custom_call.1} parent=5 // pred_check
        _
      $region10: #{tpu_custom_call.1} parent=5 // pred_check_branch
        %145 = sbr.rel (%p142) target = $region12
      $region11: #{tpu_custom_call.1} parent=5 // pred_region
        %s146 = ssub.s32 %s17, 1
        // Predicated region
        $region13: #{tpu_custom_call.1} parent=11 // pred_check
          %p147 = pneg %p64
        $region14: #{tpu_custom_call.1} parent=11 // pred_check_branch
          %149 = sbr.rel (%p147) target = $region16
        $region15: #{tpu_custom_call.1} parent=11 // pred_region
          %s151 = ssub.s32 18432, 18432
          %152 = vsyncadd [#allocation8], %s151
          %s153 = sshll.u32 [#allocation7], 4
          %s154 = int_to_ptr.vmem [resolvable:$true] %s153
          %159 = dma.hbm_to_vmem [thread:$0]  %s1, 18432, %s154, [#allocation8], 128, 128, 8
        $region16: #{tpu_custom_call.1} parent=11 // pred_fallthru
          _
        // Predicated region
        $region17: #{tpu_custom_call.1} parent=11 // pred_check
          %p160 = pneg %p85
        $region18: #{tpu_custom_call.1} parent=11 // pred_check_branch
          %162 = sbr.rel (%p160) target = $region20
        $region19: #{tpu_custom_call.1} parent=11 // pred_region
          _
        $region20: #{tpu_custom_call.1} parent=11 // pred_fallthru
          _
        // Predicated region
        $region21: #{tpu_custom_call.1} parent=11 // pred_check
          %p163 = pneg %p106
        $region22: #{tpu_custom_call.1} parent=11 // pred_check_branch
          %165 = sbr.rel (%p163) target = $region24
        $region23: #{tpu_custom_call.1} parent=11 // pred_region
          _
        $region24: #{tpu_custom_call.1} parent=11 // pred_fallthru
          _
      $region12: #{tpu_custom_call.1} parent=5 // pred_fallthru
        _
      %p166 = scmp.lt.s32.totalorder %s17, 2
      // Predicated region
      $region25: #{tpu_custom_call.1} parent=5 // pred_check
        %p167 = pneg %p166
      $region26: #{tpu_custom_call.1} parent=5 // pred_check_branch
        %169 = sbr.rel (%p167) target = $region28
      $region27: #{tpu_custom_call.1} parent=5 // pred_region
        // Predicated region
        $region29: #{tpu_custom_call.1} parent=27 // pred_check
          %p170 = pneg %p37
        $region30: #{tpu_custom_call.1} parent=27 // pred_check_branch
          %172 = sbr.rel (%p170) target = $region32
        $region31: #{tpu_custom_call.1} parent=27 // pred_region
          %s173 = sand.u32 %s27, 1
          %s174 = scalar_lea.sflag [#allocation5], %s173
          %s175 = sand.u32 %s27, 1
          %s176 = smul.addr %s175, 256
          %s177 = scalar_lea.vmem [#allocation4], %s176
          %s179 = ssub.s32 4096, 4096
          %180 = vsyncadd %s174, %s179
          %s181 = smul.addr %s17, 32
          %s182 = smul.addr %s181, 128
          %s183 = scalar_lea.hbm %s0, %s182
          %s184 = sshll.u32 %s177, 4
          %s185 = int_to_ptr.vmem [resolvable:$true] %s184
          %190 = dma.hbm_to_vmem [thread:$0]  %s183, 4096, %s185, %s174, 128, 128, 8
        $region32: #{tpu_custom_call.1} parent=27 // pred_fallthru
          _
      $region28: #{tpu_custom_call.1} parent=5 // pred_fallthru
        _
      %p191 = scmp.le.s32.totalorder 1, %s17
      %p192 = scmp.lt.s32.totalorder %s17, 3
      %p193 = pnand %p191, %p192
      %p194 = pneg %p193
      // Predicated region
      $region33: #{tpu_custom_call.1} parent=5 // pred_check
        _
      $region34: #{tpu_custom_call.1} parent=5 // pred_check_branch
        %196 = sbr.rel (%p193) target = $region36
      $region35: #{tpu_custom_call.1} parent=5 // pred_region
        %s197 = ssub.s32 %s17, 1
        %s198 = sand.u32 %s30, 1
        %s199 = scalar_lea.sflag [#allocation5], %s198
        %s200 = sand.u32 %s30, 1
        %s201 = smul.addr %s200, 256
        %s202 = scalar_lea.vmem [#allocation4], %s201
        // Predicated region
        $region37: #{tpu_custom_call.1} parent=35 // pred_check
          %p203 = pneg %p43
        $region38: #{tpu_custom_call.1} parent=35 // pred_check_branch
          %205 = sbr.rel (%p203) target = $region40
        $region39: #{tpu_custom_call.1} parent=35 // pred_region
          %206 = dma.done %s199, 4096
        $region40: #{tpu_custom_call.1} parent=35 // pred_fallthru
          _
        // Predicated region
        $region41: #{tpu_custom_call.1} parent=35 // pred_check
          %p207 = pneg %p64
        $region42: #{tpu_custom_call.1} parent=35 // pred_check_branch
          %209 = sbr.rel (%p207) target = $region44
        $region43: #{tpu_custom_call.1} parent=35 // pred_region
          %210 = dma.done [#allocation8], 18432
        $region44: #{tpu_custom_call.1} parent=35 // pred_fallthru
          _
        %s211 = sand.u32 %s30, 1
        %s212 = scalar_lea.sflag [#allocation5], %s211
        %s213 = sand.u32 %s30, 1
        %s214 = smul.addr %s213, 256
        %s215 = scalar_lea.vmem [#allocation4], %s214
        %p216 = pneg %p43
        %p217 = pneg %p40
        %p218 = pneg %p64
        %p219 = pneg %p61
        %p220 = pneg %p85
        %p221 = pneg %p82
        %p222 = pneg %p106
        %p223 = pneg %p103
        %p224 = pneg %p132
        %p225 = pneg %p129
        %s226 = sand.u32 %s119, 1
        %s227 = scalar_lea.sflag [#allocation6], %s226
        %s228 = sand.u32 %s119, 1
        %s229 = smul.addr %s228, 16
        %s230 = scalar_lea.vmem [#allocation9], %s229
        %v231 = vld [vmem:[%s202] sm:$0xff]
        %v232 = vld [vmem:[%s202 + $0x8] sm:$0xff]
        %v233 = vld [vmem:[%s202 + $0x10] sm:$0xff]
        %v234 = vld [vmem:[%s202 + $0x18] sm:$0xff]
        %v235 = vld [vmem:[%s202 + $0x20] sm:$0xff]
        %v236 = vld [vmem:[%s202 + $0x28] sm:$0xff]
        %v237 = vld [vmem:[%s202 + $0x30] sm:$0xff]
        %v238 = vld [vmem:[%s202 + $0x38] sm:$0xff]
        %v239 = vld [vmem:[%s202 + $0x40] sm:$0xff]
        %v240 = vld [vmem:[%s202 + $0x48] sm:$0xff]
        %v241 = vld [vmem:[%s202 + $0x50] sm:$0xff]
        %v242 = vld [vmem:[%s202 + $0x58] sm:$0xff]
        %v243 = vld [vmem:[%s202 + $0x60] sm:$0xff]
        %v244 = vld [vmem:[%s202 + $0x68] sm:$0xff]
        %v245 = vld [vmem:[%s202 + $0x70] sm:$0xff]
        %v246 = vld [vmem:[%s202 + $0x78] sm:$0xff]
        %v247 = vld [vmem:[%s202 + $0x80] sm:$0xff]
        %v248 = vld [vmem:[%s202 + $0x88] sm:$0xff]
        %v249 = vld [vmem:[%s202 + $0x90] sm:$0xff]
        %v250 = vld [vmem:[%s202 + $0x98] sm:$0xff]
        %v251 = vld [vmem:[%s202 + $0xa0] sm:$0xff]
        %v252 = vld [vmem:[%s202 + $0xa8] sm:$0xff]
        %v253 = vld [vmem:[%s202 + $0xb0] sm:$0xff]
        %v254 = vld [vmem:[%s202 + $0xb8] sm:$0xff]
        %v255 = vld [vmem:[%s202 + $0xc0] sm:$0xff]
        %v256 = vld [vmem:[%s202 + $0xc8] sm:$0xff]
        %v257 = vld [vmem:[%s202 + $0xd0] sm:$0xff]
        %v258 = vld [vmem:[%s202 + $0xd8] sm:$0xff]
        %v259 = vld [vmem:[%s202 + $0xe0] sm:$0xff]
        %v260 = vld [vmem:[%s202 + $0xe8] sm:$0xff]
        %v261 = vld [vmem:[%s202 + $0xf0] sm:$0xff]
        %v262 = vld [vmem:[%s202 + $0xf8] sm:$0xff]
        %v263 = vadd.f32 %v231, %v233
        %v264 = vadd.f32 %v263, %v235
        %v265 = vadd.f32 %v264, %v237
        %v266 = vadd.f32 %v232, %v234
        %v267 = vadd.f32 %v266, %v236
        %v268 = vadd.f32 %v267, %v238
        %v269 = vadd.f32 %v239, %v241
        %v270 = vadd.f32 %v269, %v243
        %v271 = vadd.f32 %v270, %v245
        %v272 = vadd.f32 %v240, %v242
        %v273 = vadd.f32 %v272, %v244
        %v274 = vadd.f32 %v273, %v246
        %v275 = vadd.f32 %v247, %v249
        %v276 = vadd.f32 %v275, %v251
        %v277 = vadd.f32 %v276, %v253
        %v278 = vadd.f32 %v248, %v250
        %v279 = vadd.f32 %v278, %v252
        %v280 = vadd.f32 %v279, %v254
        %v281 = vadd.f32 %v255, %v257
        %v282 = vadd.f32 %v281, %v259
        %v283 = vadd.f32 %v282, %v261
        %v284 = vadd.f32 %v256, %v258
        %v285 = vadd.f32 %v284, %v260
        %v286 = vadd.f32 %v285, %v262
        %vm287 = vcmask 1043456
        %v288 = vsel %vm287, %v265, 0.0
        %v289 = vrot.slane %v288, 4
        %v290 = vadd.f32 %v288, %v289
        %v291 = vrot.slane %v290, 2
        %v292 = vadd.f32 %v290, %v291
        %v293 = vrot.slane %v292, 1
        %v294 = vadd.f32 %v292, %v293
        %v295 = vsel %vm287, %v271, 0.0
        %v296 = vrot.slane %v295, 4
        %v297 = vadd.f32 %v295, %v296
        %v298 = vrot.slane %v297, 2
        %v299 = vadd.f32 %v297, %v298
        %v300 = vrot.slane %v299, 1
        %v301 = vadd.f32 %v299, %v300
        %v302 = vsel %vm287, %v277, 0.0
        %v303 = vrot.slane %v302, 4
        %v304 = vadd.f32 %v302, %v303
        %v305 = vrot.slane %v304, 2
        %v306 = vadd.f32 %v304, %v305
        %v307 = vrot.slane %v306, 1
        %v308 = vadd.f32 %v306, %v307
        %v309 = vsel %vm287, %v283, 0.0
        %v310 = vrot.slane %v309, 4
        %v311 = vadd.f32 %v309, %v310
        %v312 = vrot.slane %v311, 2
        %v313 = vadd.f32 %v311, %v312
        %v314 = vrot.slane %v313, 1
        %v315 = vadd.f32 %v313, %v314
        %v320 = vrot.slane %v265, 4
        %v321 = vrot.slane %v271, 4
        %v322 = vrot.slane %v277, 4
        %v323 = vrot.slane %v283, 4
        %v328 = vsel %vm287, %v320, 0.0
        %v329 = vrot.slane %v328, 4
        %v330 = vadd.f32 %v328, %v329
        %v331 = vrot.slane %v330, 2
        %v332 = vadd.f32 %v330, %v331
        %v333 = vrot.slane %v332, 1
        %v334 = vadd.f32 %v332, %v333
        %v335 = vsel %vm287, %v321, 0.0
        %v336 = vrot.slane %v335, 4
        %v337 = vadd.f32 %v335, %v336
        %v338 = vrot.slane %v337, 2
        %v339 = vadd.f32 %v337, %v338
        %v340 = vrot.slane %v339, 1
        %v341 = vadd.f32 %v339, %v340
        %v342 = vsel %vm287, %v322, 0.0
        %v343 = vrot.slane %v342, 4
        %v344 = vadd.f32 %v342, %v343
        %v345 = vrot.slane %v344, 2
        %v346 = vadd.f32 %v344, %v345
        %v347 = vrot.slane %v346, 1
        %v348 = vadd.f32 %v346, %v347
        %v349 = vsel %vm287, %v323, 0.0
        %v350 = vrot.slane %v349, 4
        %v351 = vadd.f32 %v349, %v350
        %v352 = vrot.slane %v351, 2
        %v353 = vadd.f32 %v351, %v352
        %v354 = vrot.slane %v353, 1
        %v355 = vadd.f32 %v353, %v354
        %v356 = vsel %vm287, %v268, 0.0
        %v357 = vrot.slane %v356, 4
        %v358 = vadd.f32 %v356, %v357
        %v359 = vrot.slane %v358, 2
        %v360 = vadd.f32 %v358, %v359
        %v361 = vrot.slane %v360, 1
        %v362 = vadd.f32 %v360, %v361
        %v363 = vsel %vm287, %v274, 0.0
        %v364 = vrot.slane %v363, 4
        %v365 = vadd.f32 %v363, %v364
        %v366 = vrot.slane %v365, 2
        %v367 = vadd.f32 %v365, %v366
        %v368 = vrot.slane %v367, 1
        %v369 = vadd.f32 %v367, %v368
        %v370 = vsel %vm287, %v280, 0.0
        %v371 = vrot.slane %v370, 4
        %v372 = vadd.f32 %v370, %v371
        %v373 = vrot.slane %v372, 2
        %v374 = vadd.f32 %v372, %v373
        %v375 = vrot.slane %v374, 1
        %v376 = vadd.f32 %v374, %v375
        %v377 = vsel %vm287, %v286, 0.0
        %v378 = vrot.slane %v377, 4
        %v379 = vadd.f32 %v377, %v378
        %v380 = vrot.slane %v379, 2
        %v381 = vadd.f32 %v379, %v380
        %v382 = vrot.slane %v381, 1
        %v383 = vadd.f32 %v381, %v382
        %v388 = vrot.slane %v268, 4
        %v389 = vrot.slane %v274, 4
        %v390 = vrot.slane %v280, 4
        %v391 = vrot.slane %v286, 4
        %v396 = vsel %vm287, %v388, 0.0
        %v397 = vrot.slane %v396, 4
        %v398 = vadd.f32 %v396, %v397
        %v399 = vrot.slane %v398, 2
        %v400 = vadd.f32 %v398, %v399
        %v401 = vrot.slane %v400, 1
        %v402 = vadd.f32 %v400, %v401
        %v403 = vsel %vm287, %v389, 0.0
        %v404 = vrot.slane %v403, 4
        %v405 = vadd.f32 %v403, %v404
        %v406 = vrot.slane %v405, 2
        %v407 = vadd.f32 %v405, %v406
        %v408 = vrot.slane %v407, 1
        %v409 = vadd.f32 %v407, %v408
        %v410 = vsel %vm287, %v390, 0.0
        %v411 = vrot.slane %v410, 4
        %v412 = vadd.f32 %v410, %v411
        %v413 = vrot.slane %v412, 2
        %v414 = vadd.f32 %v412, %v413
        %v415 = vrot.slane %v414, 1
        %v416 = vadd.f32 %v414, %v415
        %v417 = vsel %vm287, %v391, 0.0
        %v418 = vrot.slane %v417, 4
        %v419 = vadd.f32 %v417, %v418
        %v420 = vrot.slane %v419, 2
        %v421 = vadd.f32 %v419, %v420
        %v422 = vrot.slane %v421, 1
        %v423 = vadd.f32 %v421, %v422
        %vm424 = vcmask 1040384
        %v425 = vsel %vm424, %v294, %v334
        %v426 = vsel %vm424, %v301, %v341
        %v427 = vsel %vm424, %v308, %v348
        %v428 = vsel %vm424, %v315, %v355
        %vm429 = vcmask 1041408
        %v430 = vsel %vm429, %v425, %v362
        %v431 = vsel %vm429, %v426, %v369
        %v432 = vsel %vm429, %v427, %v376
        %v433 = vsel %vm429, %v428, %v383
        %vm434 = vcmask 1042432
        %v435 = vsel %vm434, %v430, %v402
        %v436 = vsel %vm434, %v431, %v409
        %v437 = vsel %vm434, %v432, %v416
        %v438 = vsel %vm434, %v433, %v423
        %v439 = vmul.f32 %v435, 0.0625
        %v440 = vmul.f32 %v436, 0.0625
        %v441 = vmul.f32 %v437, 0.0625
        %v442 = vmul.f32 %v438, 0.0625
        %443 = vst [vmem:[#allocation2] sm:$0xff] 0.0
        %444 = vst [vmem:[#allocation2 + $0x8] sm:$0xff] 0.0
        %s445 = scalar_lea.vmem [#allocation2], 48
        %446 = vst [vmem:[%s445] sm:$0xff] 0.0
        %447 = vst [vmem:[%s445 + $0x8] sm:$0xff] 0.0
        %s448 = scalar_lea.vmem [#allocation2], 16
        %449 = vst [vmem:[%s448] sm:$0x3] 0.0
        %450 = vst [vmem:[%s448 + $0x8] sm:$0x3] 0.0
        %451 = vst [vmem:[%s448 + $0x10] sm:$0x3] 0.0
        %452 = vst [vmem:[%s448 + $0x18] sm:$0x3] 0.0
        %453 = vst [vmem:[%s448 + $0x6] sm:$0x3] 0.0
        %454 = vst [vmem:[%s448 + $0xe] sm:$0x3] 0.0
        %455 = vst [vmem:[%s448 + $0x16] sm:$0x3] 0.0
        %456 = vst [vmem:[%s448 + $0x1e] sm:$0x3] 0.0
        %457 = vst [vmem:[%s448 + $0x2] sm:$0xf] %v439
        %458 = vst [vmem:[%s448 + $0xa] sm:$0xf] %v440
        %459 = vst [vmem:[%s448 + $0x12] sm:$0xf] %v441
        %460 = vst [vmem:[%s448 + $0x1a] sm:$0xf] %v442
        %v461 = vld [vmem:[#allocation2] sm:$0xf]
        %v462 = vld [vmem:[#allocation2 + $0x8] sm:$0xf]
        %v463 = vld [vmem:[#allocation2 + $0x10] sm:$0xf]
        %v464 = vld [vmem:[#allocation2 + $0x18] sm:$0xf]
        %v465 = vld [vmem:[#allocation2 + $0x20] sm:$0xf]
        %v466 = vld [vmem:[#allocation2 + $0x28] sm:$0xf]
        %v467 = vld [vmem:[#allocation2 + $0x30] sm:$0xf]
        %v468 = vld [vmem:[#allocation2 + $0x38] sm:$0xf]
        %v477 = vcombine.low %v461, %v463
        %v478 = vcombine.low %v462, %v464
        %v479 = vcombine.low %v463, %v465
        %v480 = vcombine.low %v464, %v466
        %v481 = vld [vmem:[#allocation7] sm:$0xff]
        %v482 = vld [vmem:[#allocation7 + $0x8] sm:$0xff]
        %v483 = vld [vmem:[#allocation7 + $0x10] sm:$0xff]
        %v484 = vld [vmem:[#allocation7 + $0x18] sm:$0xff]
        %v485 = vld [vmem:[#allocation7 + $0x20] sm:$0xff]
        %v486 = vld [vmem:[#allocation7 + $0x28] sm:$0xff]
        %v487 = vld [vmem:[#allocation7 + $0x30] sm:$0xff]
        %v488 = vld [vmem:[#allocation7 + $0x38] sm:$0xff]
        %v489 = vld [vmem:[#allocation7 + $0x40] sm:$0xff]
        %v490 = vld [vmem:[#allocation7 + $0x48] sm:$0xff]
        %v491 = vld [vmem:[#allocation7 + $0x50] sm:$0xff]
        %v492 = vld [vmem:[#allocation7 + $0x58] sm:$0xff]
        %v493 = vld [vmem:[#allocation7 + $0x60] sm:$0xff]
        %v494 = vld [vmem:[#allocation7 + $0x68] sm:$0xff]
        %v495 = vld [vmem:[#allocation7 + $0x70] sm:$0xff]
        %v496 = vld [vmem:[#allocation7 + $0x78] sm:$0xff]
        %v497 = vld [vmem:[#allocation7 + $0x80] sm:$0xff]
        %v498 = vld [vmem:[#allocation7 + $0x88] sm:$0xff]
        %v499 = vld [vmem:[#allocation7 + $0x90] sm:$0xff]
        %v500 = vld [vmem:[#allocation7 + $0x98] sm:$0xff]
        %v501 = vld [vmem:[#allocation7 + $0xa0] sm:$0xff]
        %v502 = vld [vmem:[#allocation7 + $0xa8] sm:$0xff]
        %v503 = vld [vmem:[#allocation7 + $0xb0] sm:$0xff]
        %v504 = vld [vmem:[#allocation7 + $0xb8] sm:$0xff]
        %v505 = vld [vmem:[#allocation7 + $0xc0] sm:$0xff]
        %v506 = vld [vmem:[#allocation7 + $0xc8] sm:$0xff]
        %v507 = vld [vmem:[#allocation7 + $0xd0] sm:$0xff]
        %v508 = vld [vmem:[#allocation7 + $0xd8] sm:$0xff]
        %v509 = vld [vmem:[#allocation7 + $0xe0] sm:$0xff]
        %v510 = vld [vmem:[#allocation7 + $0xe8] sm:$0xff]
        %v511 = vld [vmem:[#allocation7 + $0xf0] sm:$0xff]
        %v512 = vld [vmem:[#allocation7 + $0xf8] sm:$0xff]
        %v513 = vld [vmem:[#allocation7 + $0x100] sm:$0xff]
        %v514 = vld [vmem:[#allocation7 + $0x108] sm:$0xff]
        %v515 = vld [vmem:[#allocation7 + $0x110] sm:$0xff]
        %v516 = vld [vmem:[#allocation7 + $0x118] sm:$0xff]
        %v517 = vld [vmem:[#allocation7 + $0x120] sm:$0xff]
        %v518 = vld [vmem:[#allocation7 + $0x128] sm:$0xff]
        %v519 = vld [vmem:[#allocation7 + $0x130] sm:$0xff]
        %v520 = vld [vmem:[#allocation7 + $0x138] sm:$0xff]
        %v521 = vld [vmem:[#allocation7 + $0x140] sm:$0xff]
        %v522 = vld [vmem:[#allocation7 + $0x148] sm:$0xff]
        %v523 = vld [vmem:[#allocation7 + $0x150] sm:$0xff]
        %v524 = vld [vmem:[#allocation7 + $0x158] sm:$0xff]
        %v525 = vld [vmem:[#allocation7 + $0x160] sm:$0xff]
        %v526 = vld [vmem:[#allocation7 + $0x168] sm:$0xff]
        %v527 = vld [vmem:[#allocation7 + $0x170] sm:$0xff]
        %v528 = vld [vmem:[#allocation7 + $0x178] sm:$0xff]
        %v529 = vcombine.low %v477, %v478
        %v530 = vcombine.high %v477, %v478
        %v531 = vcombine.low %v465, %v466
        %v532 = vcombine.low %v479, %v480
        %v533 = vcombine.high %v479, %v480
        %v534 = vcombine.low %v467, %v468
        %541 = vmatprep.subr.mxu0 0.0
        %542 = vmatpush1.msra.mxu0 %v496
        %543 = vmatprep.subr.mxu0 0.0
        %544 = vmatpush1.msra.mxu0 %v495
        %545 = vmatprep.subr.mxu0 0.0
        %546 = vmatpush1.msra.mxu0 %v494
        %547 = vmatprep.subr.mxu0 0.0
        %548 = vmatpush1.msra.mxu0 %v493
        %549 = vmatprep.subr.mxu0 0.0
        %550 = vmatpush1.msra.mxu0 %v492
        %551 = vmatprep.subr.mxu0 0.0
        %552 = vmatpush1.msra.mxu0 %v491
        %553 = vmatprep.subr.mxu0 0.0
        %554 = vmatpush1.msra.mxu0 %v490
        %555 = vmatprep.subr.mxu0 0.0
        %556 = vmatpush1.msra.mxu0 %v489
        %557 = vmatprep.subr.mxu0 0.0
        %558 = vmatpush1.msra.mxu0 %v488
        %559 = vmatprep.subr.mxu0 0.0
        %560 = vmatpush1.msra.mxu0 %v487
        %561 = vmatprep.subr.mxu0 0.0
        %562 = vmatpush1.msra.mxu0 %v486
        %563 = vmatprep.subr.mxu0 0.0
        %564 = vmatpush1.msra.mxu0 %v485
        %565 = vmatprep.subr.mxu0 0.0
        %566 = vmatpush1.msra.mxu0 %v484
        %567 = vmatprep.subr.mxu0 0.0
        %568 = vmatpush1.msra.mxu0 %v483
        %569 = vmatprep.subr.mxu0 0.0
        %570 = vmatpush1.msra.mxu0 %v482
        %571 = vmatprep.subr.mxu0 0.0
        %572 = vmatpush1.msra.mxu0 %v481
        %573 = vmatprep.subr.mxu0 0.0
        %574 = vmatpush2.msra.mxu0 %v512
        %575 = vmatprep.subr.mxu0 0.0
        %576 = vmatpush2.msra.mxu0 %v511
        %577 = vmatprep.subr.mxu0 0.0
        %578 = vmatpush2.msra.mxu0 %v510
        %579 = vmatprep.subr.mxu0 0.0
        %580 = vmatpush2.msra.mxu0 %v509
        %581 = vmatprep.subr.mxu0 0.0
        %582 = vmatpush2.msra.mxu0 %v508
        %583 = vmatprep.subr.mxu0 0.0
        %584 = vmatpush2.msra.mxu0 %v507
        %585 = vmatprep.subr.mxu0 0.0
        %586 = vmatpush2.msra.mxu0 %v506
        %587 = vmatprep.subr.mxu0 0.0
        %588 = vmatpush2.msra.mxu0 %v505
        %589 = vmatprep.subr.mxu0 0.0
        %590 = vmatpush2.msra.mxu0 %v504
        %591 = vmatprep.subr.mxu0 0.0
        %592 = vmatpush2.msra.mxu0 %v503
        %593 = vmatprep.subr.mxu0 0.0
        %594 = vmatpush2.msra.mxu0 %v502
        %595 = vmatprep.subr.mxu0 0.0
        %596 = vmatpush2.msra.mxu0 %v501
        %597 = vmatprep.subr.mxu0 0.0
        %598 = vmatpush2.msra.mxu0 %v500
        %599 = vmatprep.subr.mxu0 0.0
        %600 = vmatpush2.msra.mxu0 %v499
        %601 = vmatprep.subr.mxu0 0.0
        %602 = vmatpush2.msra.mxu0 %v498
        %603 = vmatprep.subr.mxu0 0.0
        %604 = vmatpush2.msra.mxu0 %v497
        %605 = vmatprep.mubr.f32.mxu0 %v530
        %606 = vmatmul.mubr.f32.gmra.mxu0 %v529
        %v607 = vpop.f32.mrf.mxu0
        %v608 = vadd.f32 0.0, %v607
        %v609 = vpop.f32.mrf.mxu0
        %610 = vmatprep.mubr.f32.mxu0 %v533
        %611 = vmatmul.mubr.f32.gmra.mxu0 %v532
        %v612 = vpop.f32.mrf.mxu0
        %v613 = vadd.f32 0.0, %v612
        %v614 = vpop.f32.mrf.mxu0
        %615 = vdwg.mxu0
        %616 = vmatprep.subr.mxu0 0.0
        %617 = vmatpush1.msra.mxu0 %v528
        %618 = vmatprep.subr.mxu0 0.0
        %619 = vmatpush1.msra.mxu0 %v527
        %620 = vmatprep.subr.mxu0 0.0
        %621 = vmatpush1.msra.mxu0 %v526
        %622 = vmatprep.subr.mxu0 0.0
        %623 = vmatpush1.msra.mxu0 %v525
        %624 = vmatprep.subr.mxu0 0.0
        %625 = vmatpush1.msra.mxu0 %v524
        %626 = vmatprep.subr.mxu0 0.0
        %627 = vmatpush1.msra.mxu0 %v523
        %628 = vmatprep.subr.mxu0 0.0
        %629 = vmatpush1.msra.mxu0 %v522
        %630 = vmatprep.subr.mxu0 0.0
        %631 = vmatpush1.msra.mxu0 %v521
        %632 = vmatprep.subr.mxu0 0.0
        %633 = vmatpush1.msra.mxu0 %v520
        %634 = vmatprep.subr.mxu0 0.0
        %635 = vmatpush1.msra.mxu0 %v519
        %636 = vmatprep.subr.mxu0 0.0
        %637 = vmatpush1.msra.mxu0 %v518
        %638 = vmatprep.subr.mxu0 0.0
        %639 = vmatpush1.msra.mxu0 %v517
        %640 = vmatprep.subr.mxu0 0.0
        %641 = vmatpush1.msra.mxu0 %v516
        %642 = vmatprep.subr.mxu0 0.0
        %643 = vmatpush1.msra.mxu0 %v515
        %644 = vmatprep.subr.mxu0 0.0
        %645 = vmatpush1.msra.mxu0 %v514
        %646 = vmatprep.subr.mxu0 0.0
        %647 = vmatpush1.msra.mxu0 %v513
        %648 = vmatprep.subr.mxu0 0.0
        %649 = vmatpush2.msra.mxu0 0.0
        %650 = vmatprep.subr.mxu0 0.0
        %651 = vmatpush2.msra.mxu0 0.0
        %652 = vmatprep.subr.mxu0 0.0
        %653 = vmatpush2.msra.mxu0 0.0
        %654 = vmatprep.subr.mxu0 0.0
        %655 = vmatpush2.msra.mxu0 0.0
        %656 = vmatprep.subr.mxu0 0.0
        %657 = vmatpush2.msra.mxu0 0.0
        %658 = vmatprep.subr.mxu0 0.0
        %659 = vmatpush2.msra.mxu0 0.0
        %660 = vmatprep.subr.mxu0 0.0
        %661 = vmatpush2.msra.mxu0 0.0
        %662 = vmatprep.subr.mxu0 0.0
        %663 = vmatpush2.msra.mxu0 0.0
        %664 = vmatprep.subr.mxu0 0.0
        %665 = vmatpush2.msra.mxu0 0.0
        %666 = vmatprep.subr.mxu0 0.0
        %667 = vmatpush2.msra.mxu0 0.0
        %668 = vmatprep.subr.mxu0 0.0
        %669 = vmatpush2.msra.mxu0 0.0
        %670 = vmatprep.subr.mxu0 0.0
        %671 = vmatpush2.msra.mxu0 0.0
        %672 = vmatprep.subr.mxu0 0.0
        %673 = vmatpush2.msra.mxu0 0.0
        %674 = vmatprep.subr.mxu0 0.0
        %675 = vmatpush2.msra.mxu0 0.0
        %676 = vmatprep.subr.mxu0 0.0
        %677 = vmatpush2.msra.mxu0 0.0
        %678 = vmatprep.subr.mxu0 0.0
        %679 = vmatpush2.msra.mxu0 0.0
        %680 = vmatprep.mubr.f32.mxu0 0.0
        %681 = vmatmul.mubr.f32.gmra.mxu0 %v531
        %v682 = vpop.f32.mrf.mxu0
        %v683 = vadd.f32 %v608, %v682
        %v684 = vpop.f32.mrf.mxu0
        %685 = vmatprep.mubr.f32.mxu0 0.0
        %686 = vmatmul.mubr.f32.gmra.mxu0 %v534
        %v687 = vpop.f32.mrf.mxu0
        %v688 = vadd.f32 %v613, %v687
        %v689 = vpop.f32.mrf.mxu0
        %690 = vdwg.mxu0
        %691 = vst [vmem:[#allocation3] sm:$0xff] %v683
        %692 = vst [vmem:[#allocation3 + $0x8] sm:$0xff] %v688
        %v693 = vld [vmem:[#allocation2 + $0x2] sm:$0xf]
        %v694 = vld [vmem:[#allocation2 + $0xa] sm:$0xf]
        %v695 = vld [vmem:[#allocation2 + $0x12] sm:$0xf]
        %v696 = vld [vmem:[#allocation2 + $0x1a] sm:$0xf]
        %v697 = vld [vmem:[#allocation2 + $0x22] sm:$0xf]
        %v698 = vld [vmem:[#allocation2 + $0x2a] sm:$0xf]
        %v699 = vld [vmem:[#allocation2 + $0x32] sm:$0xf]
        %v700 = vld [vmem:[#allocation2 + $0x3a] sm:$0xf]
        %v709 = vcombine.low %v693, %v695
        %v710 = vcombine.low %v694, %v696
        %v711 = vcombine.low %v695, %v697
        %v712 = vcombine.low %v696, %v698
        %s713 = scalar_lea.vmem [#allocation7], 384
        %v714 = vld [vmem:[%s713] sm:$0xff]
        %v715 = vld [vmem:[%s713 + $0x8] sm:$0xff]
        %v716 = vld [vmem:[%s713 + $0x10] sm:$0xff]
        %v717 = vld [vmem:[%s713 + $0x18] sm:$0xff]
        %v718 = vld [vmem:[%s713 + $0x20] sm:$0xff]
        %v719 = vld [vmem:[%s713 + $0x28] sm:$0xff]
        %v720 = vld [vmem:[%s713 + $0x30] sm:$0xff]
        %v721 = vld [vmem:[%s713 + $0x38] sm:$0xff]
        %v722 = vld [vmem:[%s713 + $0x40] sm:$0xff]
        %v723 = vld [vmem:[%s713 + $0x48] sm:$0xff]
        %v724 = vld [vmem:[%s713 + $0x50] sm:$0xff]
        %v725 = vld [vmem:[%s713 + $0x58] sm:$0xff]
        %v726 = vld [vmem:[%s713 + $0x60] sm:$0xff]
        %v727 = vld [vmem:[%s713 + $0x68] sm:$0xff]
        %v728 = vld [vmem:[%s713 + $0x70] sm:$0xff]
        %v729 = vld [vmem:[%s713 + $0x78] sm:$0xff]
        %v730 = vld [vmem:[%s713 + $0x80] sm:$0xff]
        %v731 = vld [vmem:[%s713 + $0x88] sm:$0xff]
        %v732 = vld [vmem:[%s713 + $0x90] sm:$0xff]
        %v733 = vld [vmem:[%s713 + $0x98] sm:$0xff]
        %v734 = vld [vmem:[%s713 + $0xa0] sm:$0xff]
        %v735 = vld [vmem:[%s713 + $0xa8] sm:$0xff]
        %v736 = vld [vmem:[%s713 + $0xb0] sm:$0xff]
        %v737 = vld [vmem:[%s713 + $0xb8] sm:$0xff]
        %v738 = vld [vmem:[%s713 + $0xc0] sm:$0xff]
        %v739 = vld [vmem:[%s713 + $0xc8] sm:$0xff]
        %v740 = vld [vmem:[%s713 + $0xd0] sm:$0xff]
        %v741 = vld [vmem:[%s713 + $0xd8] sm:$0xff]
        %v742 = vld [vmem:[%s713 + $0xe0] sm:$0xff]
        %v743 = vld [vmem:[%s713 + $0xe8] sm:$0xff]
        %v744 = vld [vmem:[%s713 + $0xf0] sm:$0xff]
        %v745 = vld [vmem:[%s713 + $0xf8] sm:$0xff]
        %v746 = vld [vmem:[%s713 + $0x100] sm:$0xff]
        %v747 = vld [vmem:[%s713 + $0x108] sm:$0xff]
        %v748 = vld [vmem:[%s713 + $0x110] sm:$0xff]
        %v749 = vld [vmem:[%s713 + $0x118] sm:$0xff]
        %v750 = vld [vmem:[%s713 + $0x120] sm:$0xff]
        %v751 = vld [vmem:[%s713 + $0x128] sm:$0xff]
        %v752 = vld [vmem:[%s713 + $0x130] sm:$0xff]
        %v753 = vld [vmem:[%s713 + $0x138] sm:$0xff]
        %v754 = vld [vmem:[%s713 + $0x140] sm:$0xff]
        %v755 = vld [vmem:[%s713 + $0x148] sm:$0xff]
        %v756 = vld [vmem:[%s713 + $0x150] sm:$0xff]
        %v757 = vld [vmem:[%s713 + $0x158] sm:$0xff]
        %v758 = vld [vmem:[%s713 + $0x160] sm:$0xff]
        %v759 = vld [vmem:[%s713 + $0x168] sm:$0xff]
        %v760 = vld [vmem:[%s713 + $0x170] sm:$0xff]
        %v761 = vld [vmem:[%s713 + $0x178] sm:$0xff]
        %v762 = vcombine.low %v709, %v710
        %v763 = vcombine.high %v709, %v710
        %v764 = vcombine.low %v697, %v698
        %v765 = vcombine.low %v711, %v712
        %v766 = vcombine.high %v711, %v712
        %v767 = vcombine.low %v699, %v700
        %774 = vmatprep.subr.mxu0 0.0
        %775 = vmatpush1.msra.mxu0 %v729
        %776 = vmatprep.subr.mxu0 0.0
        %777 = vmatpush1.msra.mxu0 %v728
        %778 = vmatprep.subr.mxu0 0.0
        %779 = vmatpush1.msra.mxu0 %v727
        %780 = vmatprep.subr.mxu0 0.0
        %781 = vmatpush1.msra.mxu0 %v726
        %782 = vmatprep.subr.mxu0 0.0
        %783 = vmatpush1.msra.mxu0 %v725
        %784 = vmatprep.subr.mxu0 0.0
        %785 = vmatpush1.msra.mxu0 %v724
        %786 = vmatprep.subr.mxu0 0.0
        %787 = vmatpush1.msra.mxu0 %v723
        %788 = vmatprep.subr.mxu0 0.0
        %789 = vmatpush1.msra.mxu0 %v722
        %790 = vmatprep.subr.mxu0 0.0
        %791 = vmatpush1.msra.mxu0 %v721
        %792 = vmatprep.subr.mxu0 0.0
        %793 = vmatpush1.msra.mxu0 %v720
        %794 = vmatprep.subr.mxu0 0.0
        %795 = vmatpush1.msra.mxu0 %v719
        %796 = vmatprep.subr.mxu0 0.0
        %797 = vmatpush1.msra.mxu0 %v718
        %798 = vmatprep.subr.mxu0 0.0
        %799 = vmatpush1.msra.mxu0 %v717
        %800 = vmatprep.subr.mxu0 0.0
        %801 = vmatpush1.msra.mxu0 %v716
        %802 = vmatprep.subr.mxu0 0.0
        %803 = vmatpush1.msra.mxu0 %v715
        %804 = vmatprep.subr.mxu0 0.0
        %805 = vmatpush1.msra.mxu0 %v714
        %806 = vmatprep.subr.mxu0 0.0
        %807 = vmatpush2.msra.mxu0 %v745
        %808 = vmatprep.subr.mxu0 0.0
        %809 = vmatpush2.msra.mxu0 %v744
        %810 = vmatprep.subr.mxu0 0.0
        %811 = vmatpush2.msra.mxu0 %v743
        %812 = vmatprep.subr.mxu0 0.0
        %813 = vmatpush2.msra.mxu0 %v742
        %814 = vmatprep.subr.mxu0 0.0
        %815 = vmatpush2.msra.mxu0 %v741
        %816 = vmatprep.subr.mxu0 0.0
        %817 = vmatpush2.msra.mxu0 %v740
        %818 = vmatprep.subr.mxu0 0.0
        %819 = vmatpush2.msra.mxu0 %v739
        %820 = vmatprep.subr.mxu0 0.0
        %821 = vmatpush2.msra.mxu0 %v738
        %822 = vmatprep.subr.mxu0 0.0
        %823 = vmatpush2.msra.mxu0 %v737
        %824 = vmatprep.subr.mxu0 0.0
        %825 = vmatpush2.msra.mxu0 %v736
        %826 = vmatprep.subr.mxu0 0.0
        %827 = vmatpush2.msra.mxu0 %v735
        %828 = vmatprep.subr.mxu0 0.0
        %829 = vmatpush2.msra.mxu0 %v734
        %830 = vmatprep.subr.mxu0 0.0
        %831 = vmatpush2.msra.mxu0 %v733
        %832 = vmatprep.subr.mxu0 0.0
        %833 = vmatpush2.msra.mxu0 %v732
        %834 = vmatprep.subr.mxu0 0.0
        %835 = vmatpush2.msra.mxu0 %v731
        %836 = vmatprep.subr.mxu0 0.0
        %837 = vmatpush2.msra.mxu0 %v730
        %838 = vmatprep.mubr.f32.mxu0 %v763
        %839 = vmatmul.mubr.f32.gmra.mxu0 %v762
        %v840 = vpop.f32.mrf.mxu0
        %v841 = vadd.f32 0.0, %v840
        %v842 = vpop.f32.mrf.mxu0
        %843 = vmatprep.mubr.f32.mxu0 %v766
        %844 = vmatmul.mubr.f32.gmra.mxu0 %v765
        %v845 = vpop.f32.mrf.mxu0
        %v846 = vadd.f32 0.0, %v845
        %v847 = vpop.f32.mrf.mxu0
        %848 = vdwg.mxu0
        %849 = vmatprep.subr.mxu0 0.0
        %850 = vmatpush1.msra.mxu0 %v761
        %851 = vmatprep.subr.mxu0 0.0
        %852 = vmatpush1.msra.mxu0 %v760
        %853 = vmatprep.subr.mxu0 0.0
        %854 = vmatpush1.msra.mxu0 %v759
        %855 = vmatprep.subr.mxu0 0.0
        %856 = vmatpush1.msra.mxu0 %v758
        %857 = vmatprep.subr.mxu0 0.0
        %858 = vmatpush1.msra.mxu0 %v757
        %859 = vmatprep.subr.mxu0 0.0
        %860 = vmatpush1.msra.mxu0 %v756
        %861 = vmatprep.subr.mxu0 0.0
        %862 = vmatpush1.msra.mxu0 %v755
        %863 = vmatprep.subr.mxu0 0.0
        %864 = vmatpush1.msra.mxu0 %v754
        %865 = vmatprep.subr.mxu0 0.0
        %866 = vmatpush1.msra.mxu0 %v753
        %867 = vmatprep.subr.mxu0 0.0
        %868 = vmatpush1.msra.mxu0 %v752
        %869 = vmatprep.subr.mxu0 0.0
        %870 = vmatpush1.msra.mxu0 %v751
        %871 = vmatprep.subr.mxu0 0.0
        %872 = vmatpush1.msra.mxu0 %v750
        %873 = vmatprep.subr.mxu0 0.0
        %874 = vmatpush1.msra.mxu0 %v749
        %875 = vmatprep.subr.mxu0 0.0
        %876 = vmatpush1.msra.mxu0 %v748
        %877 = vmatprep.subr.mxu0 0.0
        %878 = vmatpush1.msra.mxu0 %v747
        %879 = vmatprep.subr.mxu0 0.0
        %880 = vmatpush1.msra.mxu0 %v746
        %881 = vmatprep.subr.mxu0 0.0
        %882 = vmatpush2.msra.mxu0 0.0
        %883 = vmatprep.subr.mxu0 0.0
        %884 = vmatpush2.msra.mxu0 0.0
        %885 = vmatprep.subr.mxu0 0.0
        %886 = vmatpush2.msra.mxu0 0.0
        %887 = vmatprep.subr.mxu0 0.0
        %888 = vmatpush2.msra.mxu0 0.0
        %889 = vmatprep.subr.mxu0 0.0
        %890 = vmatpush2.msra.mxu0 0.0
        %891 = vmatprep.subr.mxu0 0.0
        %892 = vmatpush2.msra.mxu0 0.0
        %893 = vmatprep.subr.mxu0 0.0
        %894 = vmatpush2.msra.mxu0 0.0
        %895 = vmatprep.subr.mxu0 0.0
        %896 = vmatpush2.msra.mxu0 0.0
        %897 = vmatprep.subr.mxu0 0.0
        %898 = vmatpush2.msra.mxu0 0.0
        %899 = vmatprep.subr.mxu0 0.0
        %900 = vmatpush2.msra.mxu0 0.0
        %901 = vmatprep.subr.mxu0 0.0
        %902 = vmatpush2.msra.mxu0 0.0
        %903 = vmatprep.subr.mxu0 0.0
        %904 = vmatpush2.msra.mxu0 0.0
        %905 = vmatprep.subr.mxu0 0.0
        %906 = vmatpush2.msra.mxu0 0.0
        %907 = vmatprep.subr.mxu0 0.0
        %908 = vmatpush2.msra.mxu0 0.0
        %909 = vmatprep.subr.mxu0 0.0
        %910 = vmatpush2.msra.mxu0 0.0
        %911 = vmatprep.subr.mxu0 0.0
        %912 = vmatpush2.msra.mxu0 0.0
        %913 = vmatprep.mubr.f32.mxu0 0.0
        %914 = vmatmul.mubr.f32.gmra.mxu0 %v764
        %v915 = vpop.f32.mrf.mxu0
        %v916 = vadd.f32 %v841, %v915
        %v917 = vpop.f32.mrf.mxu0
        %918 = vmatprep.mubr.f32.mxu0 0.0
        %919 = vmatmul.mubr.f32.gmra.mxu0 %v767
        %v920 = vpop.f32.mrf.mxu0
        %v921 = vadd.f32 %v846, %v920
        %v922 = vpop.f32.mrf.mxu0
        %923 = vdwg.mxu0
        %v924 = vld [vmem:[#allocation3] sm:$0xff]
        %v925 = vld [vmem:[#allocation3 + $0x8] sm:$0xff]
        %v926 = vadd.f32 %v924, %v916
        %v927 = vadd.f32 %v925, %v921
        %928 = vst [vmem:[#allocation3] sm:$0xff] %v926
        %929 = vst [vmem:[#allocation3 + $0x8] sm:$0xff] %v927
        %v930 = vld [vmem:[#allocation2 + $0x4] sm:$0xf]
        %v931 = vld [vmem:[#allocation2 + $0xc] sm:$0xf]
        %v932 = vld [vmem:[#allocation2 + $0x14] sm:$0xf]
        %v933 = vld [vmem:[#allocation2 + $0x1c] sm:$0xf]
        %v934 = vld [vmem:[#allocation2 + $0x24] sm:$0xf]
        %v935 = vld [vmem:[#allocation2 + $0x2c] sm:$0xf]
        %v936 = vld [vmem:[#allocation2 + $0x34] sm:$0xf]
        %v937 = vld [vmem:[#allocation2 + $0x3c] sm:$0xf]
        %v946 = vcombine.low %v930, %v932
        %v947 = vcombine.low %v931, %v933
        %v948 = vcombine.low %v932, %v934
        %v949 = vcombine.low %v933, %v935
        %s950 = scalar_lea.vmem [#allocation7], 768
        %v951 = vld [vmem:[%s950] sm:$0xff]
        %v952 = vld [vmem:[%s950 + $0x8] sm:$0xff]
        %v953 = vld [vmem:[%s950 + $0x10] sm:$0xff]
        %v954 = vld [vmem:[%s950 + $0x18] sm:$0xff]
        %v955 = vld [vmem:[%s950 + $0x20] sm:$0xff]
        %v956 = vld [vmem:[%s950 + $0x28] sm:$0xff]
        %v957 = vld [vmem:[%s950 + $0x30] sm:$0xff]
        %v958 = vld [vmem:[%s950 + $0x38] sm:$0xff]
        %v959 = vld [vmem:[%s950 + $0x40] sm:$0xff]
        %v960 = vld [vmem:[%s950 + $0x48] sm:$0xff]
        %v961 = vld [vmem:[%s950 + $0x50] sm:$0xff]
        %v962 = vld [vmem:[%s950 + $0x58] sm:$0xff]
        %v963 = vld [vmem:[%s950 + $0x60] sm:$0xff]
        %v964 = vld [vmem:[%s950 + $0x68] sm:$0xff]
        %v965 = vld [vmem:[%s950 + $0x70] sm:$0xff]
        %v966 = vld [vmem:[%s950 + $0x78] sm:$0xff]
        %v967 = vld [vmem:[%s950 + $0x80] sm:$0xff]
        %v968 = vld [vmem:[%s950 + $0x88] sm:$0xff]
        %v969 = vld [vmem:[%s950 + $0x90] sm:$0xff]
        %v970 = vld [vmem:[%s950 + $0x98] sm:$0xff]
        %v971 = vld [vmem:[%s950 + $0xa0] sm:$0xff]
        %v972 = vld [vmem:[%s950 + $0xa8] sm:$0xff]
        %v973 = vld [vmem:[%s950 + $0xb0] sm:$0xff]
        %v974 = vld [vmem:[%s950 + $0xb8] sm:$0xff]
        %v975 = vld [vmem:[%s950 + $0xc0] sm:$0xff]
        %v976 = vld [vmem:[%s950 + $0xc8] sm:$0xff]
        %v977 = vld [vmem:[%s950 + $0xd0] sm:$0xff]
        %v978 = vld [vmem:[%s950 + $0xd8] sm:$0xff]
        %v979 = vld [vmem:[%s950 + $0xe0] sm:$0xff]
        %v980 = vld [vmem:[%s950 + $0xe8] sm:$0xff]
        %v981 = vld [vmem:[%s950 + $0xf0] sm:$0xff]
        %v982 = vld [vmem:[%s950 + $0xf8] sm:$0xff]
        %v983 = vld [vmem:[%s950 + $0x100] sm:$0xff]
        %v984 = vld [vmem:[%s950 + $0x108] sm:$0xff]
        %v985 = vld [vmem:[%s950 + $0x110] sm:$0xff]
        %v986 = vld [vmem:[%s950 + $0x118] sm:$0xff]
        %v987 = vld [vmem:[%s950 + $0x120] sm:$0xff]
        %v988 = vld [vmem:[%s950 + $0x128] sm:$0xff]
        %v989 = vld [vmem:[%s950 + $0x130] sm:$0xff]
        %v990 = vld [vmem:[%s950 + $0x138] sm:$0xff]
        %v991 = vld [vmem:[%s950 + $0x140] sm:$0xff]
        %v992 = vld [vmem:[%s950 + $0x148] sm:$0xff]
        %v993 = vld [vmem:[%s950 + $0x150] sm:$0xff]
        %v994 = vld [vmem:[%s950 + $0x158] sm:$0xff]
        %v995 = vld [vmem:[%s950 + $0x160] sm:$0xff]
        %v996 = vld [vmem:[%s950 + $0x168] sm:$0xff]
        %v997 = vld [vmem:[%s950 + $0x170] sm:$0xff]
        %v998 = vld [vmem:[%s950 + $0x178] sm:$0xff]
        %v999 = vcombine.low %v946, %v947
        %v1000 = vcombine.high %v946, %v947
        %v1001 = vcombine.low %v934, %v935
        %v1002 = vcombine.low %v948, %v949
        %v1003 = vcombine.high %v948, %v949
        %v1004 = vcombine.low %v936, %v937
        %1011 = vmatprep.subr.mxu0 0.0
        %1012 = vmatpush1.msra.mxu0 %v966
        %1013 = vmatprep.subr.mxu0 0.0
        %1014 = vmatpush1.msra.mxu0 %v965
        %1015 = vmatprep.subr.mxu0 0.0
        %1016 = vmatpush1.msra.mxu0 %v964
        %1017 = vmatprep.subr.mxu0 0.0
        %1018 = vmatpush1.msra.mxu0 %v963
        %1019 = vmatprep.subr.mxu0 0.0
        %1020 = vmatpush1.msra.mxu0 %v962
        %1021 = vmatprep.subr.mxu0 0.0
        %1022 = vmatpush1.msra.mxu0 %v961
        %1023 = vmatprep.subr.mxu0 0.0
        %1024 = vmatpush1.msra.mxu0 %v960
        %1025 = vmatprep.subr.mxu0 0.0
        %1026 = vmatpush1.msra.mxu0 %v959
        %1027 = vmatprep.subr.mxu0 0.0
        %1028 = vmatpush1.msra.mxu0 %v958
        %1029 = vmatprep.subr.mxu0 0.0
        %1030 = vmatpush1.msra.mxu0 %v957
        %1031 = vmatprep.subr.mxu0 0.0
        %1032 = vmatpush1.msra.mxu0 %v956
        %1033 = vmatprep.subr.mxu0 0.0
        %1034 = vmatpush1.msra.mxu0 %v955
        %1035 = vmatprep.subr.mxu0 0.0
        %1036 = vmatpush1.msra.mxu0 %v954
        %1037 = vmatprep.subr.mxu0 0.0
        %1038 = vmatpush1.msra.mxu0 %v953
        %1039 = vmatprep.subr.mxu0 0.0
        %1040 = vmatpush1.msra.mxu0 %v952
        %1041 = vmatprep.subr.mxu0 0.0
        %1042 = vmatpush1.msra.mxu0 %v951
        %1043 = vmatprep.subr.mxu0 0.0
        %1044 = vmatpush2.msra.mxu0 %v982
        %1045 = vmatprep.subr.mxu0 0.0
        %1046 = vmatpush2.msra.mxu0 %v981
        %1047 = vmatprep.subr.mxu0 0.0
        %1048 = vmatpush2.msra.mxu0 %v980
        %1049 = vmatprep.subr.mxu0 0.0
        %1050 = vmatpush2.msra.mxu0 %v979
        %1051 = vmatprep.subr.mxu0 0.0
        %1052 = vmatpush2.msra.mxu0 %v978
        %1053 = vmatprep.subr.mxu0 0.0
        %1054 = vmatpush2.msra.mxu0 %v977
        %1055 = vmatprep.subr.mxu0 0.0
        %1056 = vmatpush2.msra.mxu0 %v976
        %1057 = vmatprep.subr.mxu0 0.0
        %1058 = vmatpush2.msra.mxu0 %v975
        %1059 = vmatprep.subr.mxu0 0.0
        %1060 = vmatpush2.msra.mxu0 %v974
        %1061 = vmatprep.subr.mxu0 0.0
        %1062 = vmatpush2.msra.mxu0 %v973
        %1063 = vmatprep.subr.mxu0 0.0
        %1064 = vmatpush2.msra.mxu0 %v972
        %1065 = vmatprep.subr.mxu0 0.0
        %1066 = vmatpush2.msra.mxu0 %v971
        %1067 = vmatprep.subr.mxu0 0.0
        %1068 = vmatpush2.msra.mxu0 %v970
        %1069 = vmatprep.subr.mxu0 0.0
        %1070 = vmatpush2.msra.mxu0 %v969
        %1071 = vmatprep.subr.mxu0 0.0
        %1072 = vmatpush2.msra.mxu0 %v968
        %1073 = vmatprep.subr.mxu0 0.0
        %1074 = vmatpush2.msra.mxu0 %v967
        %1075 = vmatprep.mubr.f32.mxu0 %v1000
        %1076 = vmatmul.mubr.f32.gmra.mxu0 %v999
        %v1077 = vpop.f32.mrf.mxu0
        %v1078 = vadd.f32 0.0, %v1077
        %v1079 = vpop.f32.mrf.mxu0
        %1080 = vmatprep.mubr.f32.mxu0 %v1003
        %1081 = vmatmul.mubr.f32.gmra.mxu0 %v1002
        %v1082 = vpop.f32.mrf.mxu0
        %v1083 = vadd.f32 0.0, %v1082
        %v1084 = vpop.f32.mrf.mxu0
        %1085 = vdwg.mxu0
        %1086 = vmatprep.subr.mxu0 0.0
        %1087 = vmatpush1.msra.mxu0 %v998
        %1088 = vmatprep.subr.mxu0 0.0
        %1089 = vmatpush1.msra.mxu0 %v997
        %1090 = vmatprep.subr.mxu0 0.0
        %1091 = vmatpush1.msra.mxu0 %v996
        %1092 = vmatprep.subr.mxu0 0.0
        %1093 = vmatpush1.msra.mxu0 %v995
        %1094 = vmatprep.subr.mxu0 0.0
        %1095 = vmatpush1.msra.mxu0 %v994
        %1096 = vmatprep.subr.mxu0 0.0
        %1097 = vmatpush1.msra.mxu0 %v993
        %1098 = vmatprep.subr.mxu0 0.0
        %1099 = vmatpush1.msra.mxu0 %v992
        %1100 = vmatprep.subr.mxu0 0.0
        %1101 = vmatpush1.msra.mxu0 %v991
        %1102 = vmatprep.subr.mxu0 0.0
        %1103 = vmatpush1.msra.mxu0 %v990
        %1104 = vmatprep.subr.mxu0 0.0
        %1105 = vmatpush1.msra.mxu0 %v989
        %1106 = vmatprep.subr.mxu0 0.0
        %1107 = vmatpush1.msra.mxu0 %v988
        %1108 = vmatprep.subr.mxu0 0.0
        %1109 = vmatpush1.msra.mxu0 %v987
        %1110 = vmatprep.subr.mxu0 0.0
        %1111 = vmatpush1.msra.mxu0 %v986
        %1112 = vmatprep.subr.mxu0 0.0
        %1113 = vmatpush1.msra.mxu0 %v985
        %1114 = vmatprep.subr.mxu0 0.0
        %1115 = vmatpush1.msra.mxu0 %v984
        %1116 = vmatprep.subr.mxu0 0.0
        %1117 = vmatpush1.msra.mxu0 %v983
        %1118 = vmatprep.subr.mxu0 0.0
        %1119 = vmatpush2.msra.mxu0 0.0
        %1120 = vmatprep.subr.mxu0 0.0
        %1121 = vmatpush2.msra.mxu0 0.0
        %1122 = vmatprep.subr.mxu0 0.0
        %1123 = vmatpush2.msra.mxu0 0.0
        %1124 = vmatprep.subr.mxu0 0.0
        %1125 = vmatpush2.msra.mxu0 0.0
        %1126 = vmatprep.subr.mxu0 0.0
        %1127 = vmatpush2.msra.mxu0 0.0
        %1128 = vmatprep.subr.mxu0 0.0
        %1129 = vmatpush2.msra.mxu0 0.0
        %1130 = vmatprep.subr.mxu0 0.0
        %1131 = vmatpush2.msra.mxu0 0.0
        %1132 = vmatprep.subr.mxu0 0.0
        %1133 = vmatpush2.msra.mxu0 0.0
        %1134 = vmatprep.subr.mxu0 0.0
        %1135 = vmatpush2.msra.mxu0 0.0
        %1136 = vmatprep.subr.mxu0 0.0
        %1137 = vmatpush2.msra.mxu0 0.0
        %1138 = vmatprep.subr.mxu0 0.0
        %1139 = vmatpush2.msra.mxu0 0.0
        %1140 = vmatprep.subr.mxu0 0.0
        %1141 = vmatpush2.msra.mxu0 0.0
        %1142 = vmatprep.subr.mxu0 0.0
        %1143 = vmatpush2.msra.mxu0 0.0
        %1144 = vmatprep.subr.mxu0 0.0
        %1145 = vmatpush2.msra.mxu0 0.0
        %1146 = vmatprep.subr.mxu0 0.0
        %1147 = vmatpush2.msra.mxu0 0.0
        %1148 = vmatprep.subr.mxu0 0.0
        %1149 = vmatpush2.msra.mxu0 0.0
        %1150 = vmatprep.mubr.f32.mxu0 0.0
        %1151 = vmatmul.mubr.f32.gmra.mxu0 %v1001
        %v1152 = vpop.f32.mrf.mxu0
        %v1153 = vadd.f32 %v1078, %v1152
        %v1154 = vpop.f32.mrf.mxu0
        %1155 = vmatprep.mubr.f32.mxu0 0.0
        %1156 = vmatmul.mubr.f32.gmra.mxu0 %v1004
        %v1157 = vpop.f32.mrf.mxu0
        %v1158 = vadd.f32 %v1083, %v1157
        %v1159 = vpop.f32.mrf.mxu0
        %1160 = vdwg.mxu0
        %v1161 = vld [vmem:[#allocation3] sm:$0xff]
        %v1162 = vld [vmem:[#allocation3 + $0x8] sm:$0xff]
        %v1163 = vadd.f32 %v1161, %v1153
        %v1164 = vadd.f32 %v1162, %v1158
        %1165 = vst [vmem:[#allocation3] sm:$0xff] %v1163
        %1166 = vst [vmem:[#allocation3 + $0x8] sm:$0xff] %v1164
        %v1167 = vld [vmem:[#allocation3] sm:$0xff]
        %v1168 = vld [vmem:[#allocation3 + $0x8] sm:$0xff]
        %v1169 = vld [vmem:[%s2] sm:$0x1]
        %v1171 = vlaneseq
        %v1172 = vshrl.u32 %v1171, 7
        %v1173 = vsub.s32 0, %v1172
        %v1174 = vrot.slane %v1169, %v1173
        %v1176 = vmul.f32 %v1167, %v1174
        %v1177 = vmul.f32 %v1168, %v1174
        %v1178 = vld [vmem:[%s3] sm:$0x1]
        %v1180 = vlaneseq
        %v1181 = vshrl.u32 %v1180, 7
        %v1182 = vsub.s32 0, %v1181
        %v1183 = vrot.slane %v1178, %v1182
        %v1185 = vadd.f32 %v1176, %v1183
        %v1186 = vadd.f32 %v1177, %v1183
        %v1189 = vcombine.high %v1185, %v1185
        %v1190 = vcombine.high %v1186, %v1186
        %1193 = vst [vmem:[%s230] sm:$0xf] %v1185
        %1194 = vst [vmem:[%s230 + $0x4] sm:$0xf] %v1189
        %1195 = vst [vmem:[%s230 + $0x8] sm:$0xf] %v1186
        %1196 = vst [vmem:[%s230 + $0xc] sm:$0xf] %v1190
        %s1197 = sand.u32 %s119, 1
        %s1198 = scalar_lea.sflag [#allocation6], %s1197
        %s1199 = sand.u32 %s119, 1
        %s1200 = smul.addr %s1199, 16
        %s1201 = scalar_lea.vmem [#allocation9], %s1200
        // Predicated region
        $region45: #{tpu_custom_call.1} parent=35 // pred_check
          %p1202 = pneg %p129
        $region46: #{tpu_custom_call.1} parent=35 // pred_check_branch
          %1204 = sbr.rel (%p1202) target = $region48
        $region47: #{tpu_custom_call.1} parent=35 // pred_region
          %s1206 = ssub.s32 256, 256
          %1207 = vsyncadd %s1198, %s1206
          %s1208 = smul.addr %s22, 4
          %s1209 = smul.addr %s1208, 64
          %s1210 = scalar_lea.hbm %s4, %s1209
          %s1211 = sshll.u32 %s1201, 4
          %s1212 = int_to_ptr.vmem [resolvable:$true] %s1211
          %1217 = dma.vmem_to_hbm [thread:$0]  %s1212, 256, %s1210, %s1198, 64, 64, 4
        $region48: #{tpu_custom_call.1} parent=35 // pred_fallthru
          _
      $region36: #{tpu_custom_call.1} parent=5 // pred_fallthru
        _
      %p1218 = scmp.le.s32.totalorder 2, %s17
      // Predicated region
      $region49: #{tpu_custom_call.1} parent=5 // pred_check
        %p1219 = pneg %p1218
      $region50: #{tpu_custom_call.1} parent=5 // pred_check_branch
        %1221 = sbr.rel (%p1219) target = $region52
      $region51: #{tpu_custom_call.1} parent=5 // pred_region
        %s1222 = ssub.s32 %s17, 2
        // Predicated region
        $region53: #{tpu_custom_call.1} parent=51 // pred_check
          %p1223 = pneg %p135
        $region54: #{tpu_custom_call.1} parent=51 // pred_check_branch
          %1225 = sbr.rel (%p1223) target = $region56
        $region55: #{tpu_custom_call.1} parent=51 // pred_region
          %s1226 = sand.u32 %s120, 1
          %s1227 = scalar_lea.sflag [#allocation6], %s1226
          %s1228 = sand.u32 %s120, 1
          %s1229 = smul.addr %s1228, 16
          %s1230 = scalar_lea.vmem [#allocation9], %s1229
          %1231 = dma.done %s1227, 256
        $region56: #{tpu_custom_call.1} parent=51 // pred_fallthru
          _
      $region52: #{tpu_custom_call.1} parent=5 // pred_fallthru
        _
    $region6: #{tpu_custom_call.1} parent=1 // loop_footer
      %s21 = sadd.s32 1, %s17
    $region7: #{tpu_custom_call.1} parent=1 // loop_footer_branch
      %16 = sbr.rel target = $region3
    $region8: #{tpu_custom_call.1} parent=1 // loop_exit
      _
    %1232 = vsyncpa [#allocation5], 1
    %s1233 = scalar_lea.sflag [#allocation5], 1
    %1234 = vsyncpa %s1233, 1
    %1235 = vsyncpa [#allocation8], 1
    %1236 = vsyncpa [#allocation6], 1
    %s1237 = scalar_lea.sflag [#allocation6], 1
    %1238 = vsyncpa %s1237, 1

</llo_original>
